<compile_context>
chip_gen: v7x
topology: tpu7x:2x2x1
jax: 0.10.0
libtpu: 0.0.40
codegen_flags: <defaults>
</compile_context>

<pallas_src>
import functools
import math

import jax
import jax.numpy as jnp
from jax.experimental import pallas as pl
from jax.experimental.pallas import tpu as pltpu

LANE = 128


def _round_up(x, m):
    return ((x + m - 1) // m) * m


def _pad2d(x, rows, cols):
    r, c = x.shape
    return jnp.pad(x, ((0, rows - r), (0, cols - c)))


def gcn_layer1_kernel(a_ref, x_ref, w1_ref, b1_ref, w2_ref, o_ref, acc_ref):
    """Row tile of  relu(A_hat @ X @ W1 + b1) @ W2  -> bf16 (lane-padded)."""
    k = pl.program_id(1)

    @pl.when(k == 0)
    def _():
        acc_ref[...] = jnp.zeros_like(acc_ref)

    # Tiled reduction over the node axis: acc += A[i, k] @ X[k]   (bf16 MXU, f32 acc).
    acc_ref[...] += jnp.dot(a_ref[...], x_ref[...],
                            preferred_element_type=jnp.float32)

    @pl.when(k == pl.num_programs(1) - 1)
    def _():
        # (A @ X) @ W1 == A @ (X @ W1): the tiny weight matmuls run ONCE per row tile
        # on VMEM-resident weights, outside the k-reduction loop.
        ax = acc_ref[...].astype(jnp.bfloat16)
        h = jnp.dot(ax, w1_ref[...], preferred_element_type=jnp.float32) + b1_ref[...]
        h = jnp.maximum(h, 0.0)                                   # ReLU
        # TODO(synk): dropout is identity (eval mode); training-mode dropout would use
        # pltpu.prng_seed / pltpu.prng_random_bits here.
        hw2 = jnp.dot(h.astype(jnp.bfloat16), w2_ref[...],
                      preferred_element_type=jnp.float32)
        o_ref[...] = hw2.astype(o_ref.dtype)


def gcn_layer2_kernel(a_ref, hw2_ref, b2_ref, o_ref, acc_ref, *, num_classes):
    """Row tile of  log_softmax(A_hat @ HW2 + b2)  -> f32 (lane-padded classes)."""
    k = pl.program_id(1)

    @pl.when(k == 0)
    def _():
        acc_ref[...] = jnp.zeros_like(acc_ref)

    acc_ref[...] += jnp.dot(a_ref[...], hw2_ref[...],
                            preferred_element_type=jnp.float32)

    @pl.when(k == pl.num_programs(1) - 1)
    def _():
        z = acc_ref[...] + b2_ref[...]
        # Mask the lane padding beyond the real class count before the softmax.
        col = jax.lax.broadcasted_iota(jnp.int32, z.shape, 1)
        zm = jnp.where(col < num_classes, z, -1e30)
        m = jnp.max(zm, axis=1, keepdims=True)
        lse = m + jnp.log(jnp.sum(jnp.exp(zm - m), axis=1, keepdims=True))
        o_ref[...] = z - lse


def gcn_forward(a_hat, x, w1, b1, w2, b2, *, tm=256, tk=256):
    """Full GCN forward. tm/tk are 128-multiples (tunable per TPU generation)."""
    n, f_in = x.shape
    hidden = w1.shape[1]
    n_classes = w2.shape[1]

    f_pad = _round_up(f_in, LANE)
    h_pad = _round_up(hidden, LANE)
    c_pad = _round_up(n_classes, LANE)
    n_pad = _round_up(n, math.lcm(tm, tk))

    # Pad + cast: A_hat and activations to bf16 (halves HBM/VMEM, 2x MXU), weights bf16,
    # biases f32. Zero padding is exact for the linear algebra; padded rows are sliced off.
    a_bf = _pad2d(a_hat.astype(jnp.float32), n_pad, n_pad).astype(jnp.bfloat16)
    x_bf = _pad2d(x.astype(jnp.float32), n_pad, f_pad).astype(jnp.bfloat16)
    w1_bf = _pad2d(w1.astype(jnp.float32), f_pad, h_pad).astype(jnp.bfloat16)
    w2_bf = _pad2d(w2.astype(jnp.float32), h_pad, c_pad).astype(jnp.bfloat16)
    b1_p = _pad2d(b1.reshape(1, -1).astype(jnp.float32), 1, h_pad)
    b2_p = _pad2d(b2.reshape(1, -1).astype(jnp.float32), 1, c_pad)

    grid = (n_pad // tm, n_pad // tk)
    cparams = pltpu.CompilerParams(dimension_semantics=("parallel", "arbitrary"))

    # ---- layer 1 (+ hidden->class transform of layer 2), bf16 out ----
    hw2 = pl.pallas_call(
        gcn_layer1_kernel,
        out_shape=jax.ShapeDtypeStruct((n_pad, c_pad), jnp.bfloat16),
        grid_spec=pltpu.PrefetchScalarGridSpec(
            num_scalar_prefetch=0,
            grid=grid,
            in_specs=[
                pl.BlockSpec((tm, tk), lambda i, k: (i, k)),          # A_hat tile
                pl.BlockSpec((tk, f_pad), lambda i, k: (k, 0)),       # X tile
                pl.BlockSpec((f_pad, h_pad), lambda i, k: (0, 0)),    # W1 (resident)
                pl.BlockSpec((1, h_pad), lambda i, k: (0, 0)),        # b1 (resident)
                pl.BlockSpec((h_pad, c_pad), lambda i, k: (0, 0)),    # W2 (resident)
            ],
            out_specs=pl.BlockSpec((tm, c_pad), lambda i, k: (i, 0)),
            scratch_shapes=[pltpu.VMEM((tm, f_pad), jnp.float32)],
        ),
        compiler_params=cparams,
    )(a_bf, x_bf, w1_bf, b1_p, w2_bf)

    # ---- layer 2 aggregation + bias + log_softmax, f32 out ----
    out_pad = pl.pallas_call(
        functools.partial(gcn_layer2_kernel, num_classes=n_classes),
        out_shape=jax.ShapeDtypeStruct((n_pad, c_pad), jnp.float32),
        grid_spec=pltpu.PrefetchScalarGridSpec(
            num_scalar_prefetch=0,
            grid=grid,
            in_specs=[
                pl.BlockSpec((tm, tk), lambda i, k: (i, k)),          # A_hat tile
                pl.BlockSpec((tk, c_pad), lambda i, k: (k, 0)),       # HW2 tile
                pl.BlockSpec((1, c_pad), lambda i, k: (0, 0)),        # b2 (resident)
            ],
            out_specs=pl.BlockSpec((tm, c_pad), lambda i, k: (i, 0)),
            scratch_shapes=[pltpu.VMEM((tm, c_pad), jnp.float32)],
        ),
        compiler_params=cparams,
    )(a_bf, hw2, b2_p)

    return out_pad[:n, :n_classes]


def build_normalized_adjacency(edge_index, num_nodes):
    """Dense A_hat = D^-1/2 (A + I) D^-1/2 from edge_index [2, E] (glue, plain JAX)."""
    src, dst = edge_index[0], edge_index[1]
    a = jnp.zeros((num_nodes, num_nodes), jnp.float32)
    a = a.at[src, dst].set(1.0)
    a = jnp.maximum(a, a.T)                        # symmetrize (undirected graph)
    a = a + jnp.eye(num_nodes, dtype=jnp.float32)  # self-loops
    deg = jnp.sum(a, axis=1)
    d_inv_sqrt = jnp.where(deg > 0, 1.0 / jnp.sqrt(deg), 0.0)
    return d_inv_sqrt[:, None] * a * d_inv_sqrt[None, :]


if __name__ == "__main__":
    # small, deterministic problem sizes (big enough to exercise a 2x2 tile grid)
    N = 512          # nodes
    F_IN = 4         # dataset.num_node_features
    HIDDEN = 16      # GCNConv hidden width
    C = 4            # dataset.num_classes
    E = 2048         # number of edges

    key = jax.random.PRNGKey(0)
    k_x, k_e, k_w1, k_w2 = jax.random.split(key, 4)

    # inputs
    x = jax.random.normal(k_x, (N, F_IN), jnp.float32)
    edge_index = jax.random.randint(k_e, (2, E), 0, N, jnp.int32)
    a_hat = build_normalized_adjacency(edge_index, N)

    # deterministic parameter init (glorot-style scale)
    w1 = jax.random.normal(k_w1, (F_IN, HIDDEN), jnp.float32) * (1.0 / jnp.sqrt(F_IN))
    b1 = jnp.zeros((HIDDEN,), jnp.float32)
    w2 = jax.random.normal(k_w2, (HIDDEN, C), jnp.float32) * (1.0 / jnp.sqrt(HIDDEN))
    b2 = jnp.zeros((C,), jnp.float32)

    out = gcn_forward(a_hat, x, w1, b1, w2, b2)
    out = jax.block_until_ready(out)

    # pure-JAX f32 reference of the same forward pass
    def reference(a, x, w1, b1, w2, b2):
        h = a @ (x @ w1) + b1
        h = jnp.maximum(h, 0.0)
        z = a @ (h @ w2) + b2
        return jax.nn.log_softmax(z, axis=1)

    ref = reference(a_hat, x, w1, b1, w2, b2)

    assert out.shape == (N, C)
    # log_softmax rows must sum to ~1 in probability space
    assert jnp.allclose(jnp.sum(jnp.exp(out), axis=1), 1.0, atol=1e-3)
    # bf16 matmuls vs f32 reference: loose tolerance
    assert jnp.allclose(out, ref, atol=0.1, rtol=0.1), float(jnp.max(jnp.abs(out - ref)))

    print("KERNEL_OK")
</pallas_src>

<mosaic_0001>
module attributes {stable_mosaic.version = 11 : i64} {
  func.func @gcn_layer1_kernel(%arg0: i32, %arg1: i32, %arg2: memref<256x256xbf16, #tpu.memory_space<vmem>>, %arg3: memref<256x128xbf16, #tpu.memory_space<vmem>>, %arg4: memref<128x128xbf16, #tpu.memory_space<vmem>>, %arg5: memref<1x128xf32, #tpu.memory_space<vmem>>, %arg6: memref<128x128xbf16, #tpu.memory_space<vmem>>, %arg7: memref<256x128xbf16, #tpu.memory_space<vmem>>, %arg8: memref<256x128xf32, #tpu.memory_space<vmem>>) attributes {dimension_semantics = [#tpu.dimension_semantics<parallel>, #tpu.dimension_semantics<arbitrary>], iteration_bounds = array<i64: 2, 2>, scalar_prefetch = 0 : i64, scratch_operands = 1 : i64, tpu.core_type = #tpu.core_type<tc>, window_params = [{transform_indices = @transform_0, window_bounds = array<i64: 256, 256>}, {transform_indices = @transform_1, window_bounds = array<i64: 256, 128>}, {pipeline_mode = #tpu.pipeline_mode<synchronous>, transform_indices = @transform_2, window_bounds = array<i64: 128, 128>}, {pipeline_mode = #tpu.pipeline_mode<synchronous>, transform_indices = @transform_3, window_bounds = array<i64: 1, 128>}, {pipeline_mode = #tpu.pipeline_mode<synchronous>, transform_indices = @transform_4, window_bounds = array<i64: 128, 128>}, {transform_indices = @transform_5, window_bounds = array<i64: 256, 128>}]} {
    %c0_i32 = arith.constant 0 : i32
    %0 = arith.cmpi eq, %arg1, %c0_i32 : i32
    %1 = arith.extui %0 : i1 to i32
    %c0_i32_0 = arith.constant 0 : i32
    %2 = arith.cmpi ne, %1, %c0_i32_0 : i32
    scf.if %2 {
      %cst_9 = arith.constant 0.000000e+00 : f32
      %12 = vector.broadcast %cst_9 : f32 to vector<256x128xf32>
      %c0_10 = arith.constant 0 : index
      %c0_11 = arith.constant 0 : index
      %13 = vector.load %arg8[%c0_10, %c0_11] : memref<256x128xf32, #tpu.memory_space<vmem>>, vector<256x128xf32>
      tpu.vector_store %arg8[%c0_10, %c0_11], %12 {strides = array<i32>} : memref<256x128xf32, #tpu.memory_space<vmem>>, vector<256x128xf32>,
    } else {
    }
    %c0 = arith.constant 0 : index
    %c0_1 = arith.constant 0 : index
    %3 = vector.load %arg8[%c0, %c0_1] : memref<256x128xf32, #tpu.memory_space<vmem>>, vector<256x128xf32>
    %c0_2 = arith.constant 0 : index
    %c0_3 = arith.constant 0 : index
    %4 = vector.load %arg2[%c0_2, %c0_3] : memref<256x256xbf16, #tpu.memory_space<vmem>>, vector<256x256xbf16>
    %c0_4 = arith.constant 0 : index
    %c0_5 = arith.constant 0 : index
    %5 = vector.load %arg3[%c0_4, %c0_5] : memref<256x128xbf16, #tpu.memory_space<vmem>>, vector<256x128xbf16>
    %cst = arith.constant dense<0.000000e+00> : vector<256x128xf32>
    %6 = tpu.matmul %4, %5, %cst {dimension_numbers = #tpu.dot_dimension_numbers<[1], [0], [0], [1], [0, 0, 1, 1], [], []>} : vector<256x256xbf16>, vector<256x128xbf16>, vector<256x128xf32> -> vector<256x128xf32>
    %7 = arith.addf %3, %6 : vector<256x128xf32>
    %c0_6 = arith.constant 0 : index
    %c0_7 = arith.constant 0 : index
    %8 = vector.load %arg8[%c0_6, %c0_7] : memref<256x128xf32, #tpu.memory_space<vmem>>, vector<256x128xf32>
    tpu.vector_store %arg8[%c0_6, %c0_7], %7 {strides = array<i32>} : memref<256x128xf32, #tpu.memory_space<vmem>>, vector<256x128xf32>,
    %c1_i32 = arith.constant 1 : i32
    %9 = arith.cmpi eq, %arg1, %c1_i32 : i32
    %10 = arith.extui %9 : i1 to i32
    %c0_i32_8 = arith.constant 0 : i32
    %11 = arith.cmpi ne, %10, %c0_i32_8 : i32
    scf.if %11 {
      %c0_9 = arith.constant 0 : index
      %c0_10 = arith.constant 0 : index
      %12 = vector.load %arg8[%c0_9, %c0_10] : memref<256x128xf32, #tpu.memory_space<vmem>>, vector<256x128xf32>
      %13 = arith.truncf %12 : vector<256x128xf32> to vector<256x128xbf16>
      %c0_11 = arith.constant 0 : index
      %c0_12 = arith.constant 0 : index
      %14 = vector.load %arg4[%c0_11, %c0_12] : memref<128x128xbf16, #tpu.memory_space<vmem>>, vector<128x128xbf16>
      %cst_13 = arith.constant dense<0.000000e+00> : vector<256x128xf32>
      %15 = tpu.matmul %13, %14, %cst_13 {dimension_numbers = #tpu.dot_dimension_numbers<[1], [0], [0], [1], [0, 0, 1, 1], [], []>} : vector<256x128xbf16>, vector<128x128xbf16>, vector<256x128xf32> -> vector<256x128xf32>
      %c0_14 = arith.constant 0 : index
      %c0_15 = arith.constant 0 : index
      %16 = vector.load %arg5[%c0_14, %c0_15] : memref<1x128xf32, #tpu.memory_space<vmem>>, vector<1x128xf32>
      %17 = vector.broadcast %16 : vector<1x128xf32> to vector<256x128xf32>
      %18 = arith.addf %15, %17 : vector<256x128xf32>
      %cst_16 = arith.constant 0.000000e+00 : f32
      %19 = vector.broadcast %cst_16 : f32 to vector<256x128xf32>
      %20 = arith.maximumf %18, %19 : vector<256x128xf32>
      %21 = arith.truncf %20 : vector<256x128xf32> to vector<256x128xbf16>
      %c0_17 = arith.constant 0 : index
      %c0_18 = arith.constant 0 : index
      %22 = vector.load %arg6[%c0_17, %c0_18] : memref<128x128xbf16, #tpu.memory_space<vmem>>, vector<128x128xbf16>
      %cst_19 = arith.constant dense<0.000000e+00> : vector<256x128xf32>
      %23 = tpu.matmul %21, %22, %cst_19 {dimension_numbers = #tpu.dot_dimension_numbers<[1], [0], [0], [1], [0, 0, 1, 1], [], []>} : vector<256x128xbf16>, vector<128x128xbf16>, vector<256x128xf32> -> vector<256x128xf32>
      %24 = arith.truncf %23 : vector<256x128xf32> to vector<256x128xbf16>
      %c0_20 = arith.constant 0 : index
      %c0_21 = arith.constant 0 : index
      %25 = vector.load %arg7[%c0_20, %c0_21] : memref<256x128xbf16, #tpu.memory_space<vmem>>, vector<256x128xbf16>
      tpu.vector_store %arg7[%c0_20, %c0_21], %24 {strides = array<i32>} : memref<256x128xbf16, #tpu.memory_space<vmem>>, vector<256x128xbf16>,
    } else {
    }
    return
  }
  func.func @transform_0(%arg0: i32, %arg1: i32) -> (i32, i32) {
    %c0_i32 = arith.constant 0 : i32
    return %arg0, %arg1 : i32, i32
  }
  func.func @transform_1(%arg0: i32, %arg1: i32) -> (i32, i32) {
    %c0_i32 = arith.constant 0 : i32
    %c0_i32_0 = arith.constant 0 : i32
    return %arg1, %c0_i32 : i32, i32
  }
  func.func @transform_2(%arg0: i32, %arg1: i32) -> (i32, i32) {
    %c0_i32 = arith.constant 0 : i32
    %c0_i32_0 = arith.constant 0 : i32
    %c0_i32_1 = arith.constant 0 : i32
    return %c0_i32, %c0_i32_0 : i32, i32
  }
  func.func @transform_3(%arg0: i32, %arg1: i32) -> (i32, i32) {
    %c0_i32 = arith.constant 0 : i32
    %c0_i32_0 = arith.constant 0 : i32
    %c0_i32_1 = arith.constant 0 : i32
    return %c0_i32, %c0_i32_0 : i32, i32
  }
  func.func @transform_4(%arg0: i32, %arg1: i32) -> (i32, i32) {
    %c0_i32 = arith.constant 0 : i32
    %c0_i32_0 = arith.constant 0 : i32
    %c0_i32_1 = arith.constant 0 : i32
    return %c0_i32, %c0_i32_0 : i32, i32
  }
  func.func @transform_5(%arg0: i32, %arg1: i32) -> (i32, i32) {
    %c0_i32 = arith.constant 0 : i32
    %c0_i32_0 = arith.constant 0 : i32
    return %arg0, %c0_i32 : i32, i32
  }
}

</mosaic_0001>

<llo_original>
// kernel: tpu_custom_call.1
$region0: #{tpu_custom_call.1}
  #allocation0 [shape = 'u32[]', space=smem, size = 0x4, offset = 0x4, fixed_abs, tag = 'smem constant byte address 0x4 - core index']
  #allocation1 [shape = 'u32[144,128]{1,0:T(1,128)}', space=vmem, size = 0x12000, scoped, tag = 'internal scratch']
  #allocation2 [shape = 'f32[256,128]{1,0:T(8,128)}', space=vmem, size = 0x20000, scoped, tag = 'scratch operand']
  %s0 = inlined_call_operand.hbm [shape: bf16[512,512], index: 0, kind: input, shape index: {}]
  %s1 = inlined_call_operand.hbm [shape: bf16[512,128], index: 1, kind: input, shape index: {}]
  %s2 = inlined_call_operand.hbm [shape: bf16[128,128], index: 2, kind: input, shape index: {}]
  %s3 = inlined_call_operand.vmem [shape: f32[1,128], index: 3, kind: input, shape index: {}]
  %s4 = inlined_call_operand.hbm [shape: bf16[128,128], index: 4, kind: input, shape index: {}]
  %s5 = inlined_call_operand.hbm [shape: bf16[512,128], index: 5, kind: output, shape index: {}]
  %s6 = sld [smem:[#allocation0]]
  $region77: #{tpu_custom_call.1} parent=0
    _
  %s8 = ssub.s32 1, %s6
  %s9 = scalar_select 0, %s8, %s6
  $region1: #{tpu_custom_call.1} parent=0
    #allocation3 [shape = 'u8[262144]{0}', space=vmem, size = 0x40000, scoped, tag = 'input window, operand 0']
    #allocation4 [shape = 's32[2]{0}', space=sflag, size = 0x8, scoped, tag = 'scoped memory for tpu_custom_call.1']
    #allocation5 [shape = 's32[2]{0}', space=sflag, size = 0x8, scoped, tag = 'scoped memory for tpu_custom_call.1']
    #allocation6 [shape = 'u8[131072]{0}', space=vmem, size = 0x20000, scoped, tag = 'input window, operand 1']
    #allocation7 [shape = 's32[2]{0}', space=sflag, size = 0x8, scoped, tag = 'scoped memory for tpu_custom_call.1']
    #allocation8 [shape = 'u8[32768]{0}', space=vmem, size = 0x8000, scoped, tag = 'input window, operand 2, single buffered']
    #allocation9 [shape = 'u8[32768]{0}', space=vmem, size = 0x8000, scoped, tag = 'input window, operand 4, single buffered']
    #allocation10 [shape = 's32[1]{0}', space=sflag, size = 0x4, scoped, tag = 'scoped memory for tpu_custom_call.1']
    #allocation11 [shape = 'u8[131072]{0}', space=vmem, size = 0x20000, scoped, tag = 'output window, operand 0']
    %10 = vsyncpa [#allocation4], 0
    %s11 = scalar_lea.sflag [#allocation4], 1
    %12 = vsyncpa %s11, 0
    %13 = vsyncpa [#allocation7], 0
    %s14 = scalar_lea.sflag [#allocation7], 1
    %15 = vsyncpa %s14, 0
    %16 = vsyncpa [#allocation10], 0
    %17 = vsyncpa [#allocation5], 0
    %s18 = scalar_lea.sflag [#allocation5], 1
    %19 = vsyncpa %s18, 0
    loop: start=0, step=1, limit=6
    $region2: #{tpu_custom_call.1} parent=1 // loop_pre_header
      _
    $region3: #{tpu_custom_call.1} parent=1 // loop_header
      %s21 = sphi 0, %s25
      %p22 = scmp.ge.s32.totalorder %s21, 6
      %s28 = sphi 0, %s40
      %s29 = sphi 0, %s36
      %s30 = sphi 0, %s28
      %s31 = sphi 0, %s29
      %s32 = sphi 0, %s30
      %s33 = sphi 0, %s31
      %s45 = sphi 0, %s47
      %s48 = sphi 0, %s45
      %s49 = sphi 0, %s48
      %s65 = sphi 0, %s49
      %s71 = sphi 0, %s73
      %s74 = sphi 0, %s71
      %s75 = sphi 0, %s74
      %s91 = sphi 0, %s75
      %s95 = sphi 0, %s95
      %s97 = sphi 0, %s95
      %s98 = sphi 0, %s97
      %s112 = sphi 0, %s98
      %s116 = sphi 0, %s116
      %s118 = sphi 0, %s116
      %s119 = sphi 0, %s118
      %s133 = sphi 0, %s119
      %s137 = sphi 0, %s137
      %s139 = sphi 0, %s137
      %s140 = sphi 0, %s139
      %s154 = sphi 0, %s140
      %s160 = sphi 0, %s162
      %s163 = sphi 0, %s160
      %s164 = sphi 0, %s163
      %s180 = sphi 0, %s164
    $region4: #{tpu_custom_call.1} parent=1 // loop_header_branch
      %24 = sbr.rel (%p22) target = $region8
    $region5: #{tpu_custom_call.1} parent=1 // loop_body
      %s26 = ssub.s32 %s21, 1
      %s27 = ssub.s32 %s21, 2
      %s34 = sadd.s32 1, %s29
      %p35 = scmp.ge.s32.totalorder %s34, 2
      %s36 = scalar_select %p35, 0, %s34
      %s37 = sadd.s32 1, %s28
      %s38 = scalar_select %p35, %s37, %s28
      %p39 = scmp.ge.s32.totalorder %s38, 2
      %s40 = scalar_select %p39, 0, %s38
      %s41 = ssub.s32 %s28, %s40
      %s42 = ssub.s32 %s29, %s36
      %s43 = sor.u32 %s41, %s42
      %p44 = scmp.eq.s32.totalorder %s43, 0
      %s46 = sadd.s32 %s45, 1
      %s47 = scalar_select %p44, %s45, %s46
      %p50 = pneg %p44
      %p51 = scmp.eq.s32.totalorder %s21, 3
      %p52 = por %p50, %p51
      %p53 = scmp.ne.s32.totalorder %s45, %s48
      %p54 = scmp.eq.s32.totalorder %s21, 0
      %p55 = por %p53, %p54
      %p56 = scmp.ne.s32.totalorder %s45, %s48
      %p57 = scmp.eq.s32.totalorder %s26, 3
      %p58 = por %p56, %p57
      %p59 = scmp.ne.s32.totalorder %s48, %s49
      %p60 = scmp.eq.s32.totalorder %s26, 0
      %p61 = por %p59, %p60
      %p62 = scmp.ne.s32.totalorder %s48, %s49
      %p63 = scmp.eq.s32.totalorder %s27, 3
      %p64 = por %p62, %p63
      %p66 = scmp.ne.s32.totalorder %s49, %s65
      %p67 = scmp.eq.s32.totalorder %s27, 0
      %p68 = por %p66, %p67
      %s69 = ssub.s32 %s29, %s36
      %p70 = scmp.eq.s32.totalorder %s69, 0
      %s72 = sadd.s32 %s71, 1
      %s73 = scalar_select %p70, %s71, %s72
      %p76 = pneg %p70
      %p77 = scmp.eq.s32.totalorder %s21, 3
      %p78 = por %p76, %p77
      %p79 = scmp.ne.s32.totalorder %s71, %s74
      %p80 = scmp.eq.s32.totalorder %s21, 0
      %p81 = por %p79, %p80
      %p82 = scmp.ne.s32.totalorder %s71, %s74
      %p83 = scmp.eq.s32.totalorder %s26, 3
      %p84 = por %p82, %p83
      %p85 = scmp.ne.s32.totalorder %s74, %s75
      %p86 = scmp.eq.s32.totalorder %s26, 0
      %p87 = por %p85, %p86
      %p88 = scmp.ne.s32.totalorder %s74, %s75
      %p89 = scmp.eq.s32.totalorder %s27, 3
      %p90 = por %p88, %p89
      %p92 = scmp.ne.s32.totalorder %s75, %s91
      %p93 = scmp.eq.s32.totalorder %s27, 0
      %p94 = por %p92, %p93
      %s96 = sadd.s32 %s95, 1
      %p99 = scmp.eq.s32.totalorder %s21, 3
      %p100 = scmp.ne.s32.totalorder %s95, %s97
      %p101 = scmp.eq.s32.totalorder %s21, 0
      %p102 = por %p100, %p101
      %p103 = scmp.ne.s32.totalorder %s95, %s97
      %p104 = scmp.eq.s32.totalorder %s26, 3
      %p105 = por %p103, %p104
      %p106 = scmp.ne.s32.totalorder %s97, %s98
      %p107 = scmp.eq.s32.totalorder %s26, 0
      %p108 = por %p106, %p107
      %p109 = scmp.ne.s32.totalorder %s97, %s98
      %p110 = scmp.eq.s32.totalorder %s27, 3
      %p111 = por %p109, %p110
      %p113 = scmp.ne.s32.totalorder %s98, %s112
      %p114 = scmp.eq.s32.totalorder %s27, 0
      %p115 = por %p113, %p114
      %s117 = sadd.s32 %s116, 1
      %p120 = scmp.eq.s32.totalorder %s21, 3
      %p121 = scmp.ne.s32.totalorder %s116, %s118
      %p122 = scmp.eq.s32.totalorder %s21, 0
      %p123 = por %p121, %p122
      %p124 = scmp.ne.s32.totalorder %s116, %s118
      %p125 = scmp.eq.s32.totalorder %s26, 3
      %p126 = por %p124, %p125
      %p127 = scmp.ne.s32.totalorder %s118, %s119
      %p128 = scmp.eq.s32.totalorder %s26, 0
      %p129 = por %p127, %p128
      %p130 = scmp.ne.s32.totalorder %s118, %s119
      %p131 = scmp.eq.s32.totalorder %s27, 3
      %p132 = por %p130, %p131
      %p134 = scmp.ne.s32.totalorder %s119, %s133
      %p135 = scmp.eq.s32.totalorder %s27, 0
      %p136 = por %p134, %p135
      %s138 = sadd.s32 %s137, 1
      %p141 = scmp.eq.s32.totalorder %s21, 3
      %p142 = scmp.ne.s32.totalorder %s137, %s139
      %p143 = scmp.eq.s32.totalorder %s21, 0
      %p144 = por %p142, %p143
      %p145 = scmp.ne.s32.totalorder %s137, %s139
      %p146 = scmp.eq.s32.totalorder %s26, 3
      %p147 = por %p145, %p146
      %p148 = scmp.ne.s32.totalorder %s139, %s140
      %p149 = scmp.eq.s32.totalorder %s26, 0
      %p150 = por %p148, %p149
      %p151 = scmp.ne.s32.totalorder %s139, %s140
      %p152 = scmp.eq.s32.totalorder %s27, 3
      %p153 = por %p151, %p152
      %p155 = scmp.ne.s32.totalorder %s140, %s154
      %p156 = scmp.eq.s32.totalorder %s27, 0
      %p157 = por %p155, %p156
      %s158 = ssub.s32 %s28, %s40
      %p159 = scmp.eq.s32.totalorder %s158, 0
      %s161 = sadd.s32 %s160, 1
      %s162 = scalar_select %p159, %s160, %s161
      %p165 = pneg %p159
      %p166 = scmp.eq.s32.totalorder %s21, 3
      %p167 = por %p165, %p166
      %p168 = scmp.ne.s32.totalorder %s160, %s163
      %p169 = scmp.eq.s32.totalorder %s21, 0
      %p170 = por %p168, %p169
      %p171 = scmp.ne.s32.totalorder %s160, %s163
      %p172 = scmp.eq.s32.totalorder %s26, 3
      %p173 = por %p171, %p172
      %p174 = scmp.ne.s32.totalorder %s163, %s164
      %p175 = scmp.eq.s32.totalorder %s26, 0
      %p176 = por %p174, %p175
      %p177 = scmp.ne.s32.totalorder %s163, %s164
      %p178 = scmp.eq.s32.totalorder %s27, 3
      %p179 = por %p177, %p178
      %p181 = scmp.ne.s32.totalorder %s164, %s180
      %p182 = scmp.eq.s32.totalorder %s27, 0
      %p183 = por %p181, %p182
      %p184 = scmp.le.s32.totalorder 1, %s21
      %p185 = scmp.lt.s32.totalorder %s21, 5
      %p186 = pnand %p184, %p185
      %p187 = pneg %p186
      // Predicated region
      $region9: #{tpu_custom_call.1} parent=5 // pred_check
        _
      $region10: #{tpu_custom_call.1} parent=5 // pred_check_branch
        %189 = sbr.rel (%p186) target = $region12
      $region11: #{tpu_custom_call.1} parent=5 // pred_region
        %s190 = ssub.s32 %s21, 1
        // Predicated region
        $region13: #{tpu_custom_call.1} parent=11 // pred_check
          %p191 = pneg %p108
        $region14: #{tpu_custom_call.1} parent=11 // pred_check_branch
          %193 = sbr.rel (%p191) target = $region16
        $region15: #{tpu_custom_call.1} parent=11 // pred_region
          %s195 = ssub.s32 1024, 1024
          %196 = vsyncadd [#allocation7], %s195
          %s197 = sshll.u32 [#allocation8], 4
          %s198 = int_to_ptr.vmem [resolvable:$true] %s197
          %203 = dma.hbm_to_vmem [thread:$0]  %s2, 1024, %s198, [#allocation7], 64, 64, 4
        $region16: #{tpu_custom_call.1} parent=11 // pred_fallthru
          _
        // Predicated region
        $region17: #{tpu_custom_call.1} parent=11 // pred_check
          %p204 = pneg %p129
        $region18: #{tpu_custom_call.1} parent=11 // pred_check_branch
          %206 = sbr.rel (%p204) target = $region20
        $region19: #{tpu_custom_call.1} parent=11 // pred_region
          _
        $region20: #{tpu_custom_call.1} parent=11 // pred_fallthru
          _
        // Predicated region
        $region21: #{tpu_custom_call.1} parent=11 // pred_check
          %p207 = pneg %p150
        $region22: #{tpu_custom_call.1} parent=11 // pred_check_branch
          %209 = sbr.rel (%p207) target = $region24
        $region23: #{tpu_custom_call.1} parent=11 // pred_region
          %s211 = ssub.s32 1024, 1024
          %212 = vsyncadd [#allocation10], %s211
          %s213 = sshll.u32 [#allocation9], 4
          %s214 = int_to_ptr.vmem [resolvable:$true] %s213
          %219 = dma.hbm_to_vmem [thread:$0]  %s4, 1024, %s214, [#allocation10], 64, 64, 4
        $region24: #{tpu_custom_call.1} parent=11 // pred_fallthru
          _
      $region12: #{tpu_custom_call.1} parent=5 // pred_fallthru
        _
      %p220 = scmp.lt.s32.totalorder %s21, 4
      // Predicated region
      $region25: #{tpu_custom_call.1} parent=5 // pred_check
        %p221 = pneg %p220
      $region26: #{tpu_custom_call.1} parent=5 // pred_check_branch
        %223 = sbr.rel (%p221) target = $region28
      $region27: #{tpu_custom_call.1} parent=5 // pred_region
        // Predicated region
        $region29: #{tpu_custom_call.1} parent=27 // pred_check
          %p224 = pneg %p55
        $region30: #{tpu_custom_call.1} parent=27 // pred_check_branch
          %226 = sbr.rel (%p224) target = $region32
        $region31: #{tpu_custom_call.1} parent=27 // pred_region
          %s227 = sand.u32 %s45, 1
          %s228 = scalar_lea.sflag [#allocation4], %s227
          %s229 = sand.u32 %s45, 1
          %s230 = smul.addr %s229, 256
          %s231 = scalar_lea.vmem [#allocation3], %s230
          %s232 = smul.u32 32, %s28
          %s233 = smul.u32 2, %s29
          %s235 = ssub.s32 4096, 4096
          %236 = vsyncadd %s228, %s235
          %s237 = smul.addr %s232, 4
          %s238 = sadd.s32 %s233, %s237
          %s239 = smul.addr %s238, 64
          %s240 = scalar_lea.hbm %s0, %s239
          %s241 = sshll.u32 %s231, 4
          %s242 = int_to_ptr.vmem [resolvable:$true] %s241
          %247 = dma.hbm_to_vmem [thread:$0]  %s240, 4096, %s242, %s228, 256, 128, 8
        $region32: #{tpu_custom_call.1} parent=27 // pred_fallthru
          _
        // Predicated region
        $region33: #{tpu_custom_call.1} parent=27 // pred_check
          %p248 = pneg %p81
        $region34: #{tpu_custom_call.1} parent=27 // pred_check_branch
          %250 = sbr.rel (%p248) target = $region36
        $region35: #{tpu_custom_call.1} parent=27 // pred_region
          %s251 = sand.u32 %s21, 1
          %s252 = scalar_lea.sflag [#allocation7], %s251
          %s253 = sand.u32 %s71, 1
          %s254 = smul.addr %s253, 128
          %s255 = scalar_lea.vmem [#allocation6], %s254
          %s256 = smul.u32 32, %s29
          %s258 = ssub.s32 2048, 2048
          %259 = vsyncadd %s252, %s258
          %s260 = smul.addr %s256, 64
          %s261 = scalar_lea.hbm %s1, %s260
          %s262 = sshll.u32 %s255, 4
          %s263 = int_to_ptr.vmem [resolvable:$true] %s262
          %268 = dma.hbm_to_vmem [thread:$0]  %s261, 2048, %s263, %s252, 64, 64, 4
        $region36: #{tpu_custom_call.1} parent=27 // pred_fallthru
          _
      $region28: #{tpu_custom_call.1} parent=5 // pred_fallthru
        _
      %p269 = scmp.le.s32.totalorder 1, %s21
      %p270 = scmp.lt.s32.totalorder %s21, 5
      %p271 = pnand %p269, %p270
      %p272 = pneg %p271
      // Predicated region
      $region37: #{tpu_custom_call.1} parent=5 // pred_check
        _
      $region38: #{tpu_custom_call.1} parent=5 // pred_check_branch
        %274 = sbr.rel (%p271) target = $region40
      $region39: #{tpu_custom_call.1} parent=5 // pred_region
        %s275 = ssub.s32 %s21, 1
        %s276 = sand.u32 %s48, 1
        %s277 = scalar_lea.sflag [#allocation4], %s276
        %s278 = sand.u32 %s48, 1
        %s279 = smul.addr %s278, 256
        %s280 = scalar_lea.vmem [#allocation3], %s279
        // Predicated region
        $region41: #{tpu_custom_call.1} parent=39 // pred_check
          %p281 = pneg %p61
        $region42: #{tpu_custom_call.1} parent=39 // pred_check_branch
          %283 = sbr.rel (%p281) target = $region44
        $region43: #{tpu_custom_call.1} parent=39 // pred_region
          %284 = dma.done %s277, 4096
        $region44: #{tpu_custom_call.1} parent=39 // pred_fallthru
          _
        %s285 = sand.u32 %s26, 1
        %s286 = scalar_lea.sflag [#allocation7], %s285
        %s287 = sand.u32 %s74, 1
        %s288 = smul.addr %s287, 128
        %s289 = scalar_lea.vmem [#allocation6], %s288
        // Predicated region
        $region45: #{tpu_custom_call.1} parent=39 // pred_check
          %p290 = pneg %p87
        $region46: #{tpu_custom_call.1} parent=39 // pred_check_branch
          %292 = sbr.rel (%p290) target = $region48
        $region47: #{tpu_custom_call.1} parent=39 // pred_region
          %293 = dma.done %s286, 2048
        $region48: #{tpu_custom_call.1} parent=39 // pred_fallthru
          _
        // Predicated region
        $region49: #{tpu_custom_call.1} parent=39 // pred_check
          %p294 = pneg %p108
        $region50: #{tpu_custom_call.1} parent=39 // pred_check_branch
          %296 = sbr.rel (%p294) target = $region52
        $region51: #{tpu_custom_call.1} parent=39 // pred_region
          %297 = dma.done [#allocation7], 1024
        $region52: #{tpu_custom_call.1} parent=39 // pred_fallthru
          _
        // Predicated region
        $region53: #{tpu_custom_call.1} parent=39 // pred_check
          %p298 = pneg %p150
        $region54: #{tpu_custom_call.1} parent=39 // pred_check_branch
          %300 = sbr.rel (%p298) target = $region56
        $region55: #{tpu_custom_call.1} parent=39 // pred_region
          %301 = dma.done [#allocation10], 1024
        $region56: #{tpu_custom_call.1} parent=39 // pred_fallthru
          _
        %s302 = sand.u32 %s48, 1
        %s303 = scalar_lea.sflag [#allocation4], %s302
        %s304 = sand.u32 %s48, 1
        %s305 = smul.addr %s304, 256
        %s306 = scalar_lea.vmem [#allocation3], %s305
        %p307 = pneg %p61
        %p308 = pneg %p58
        %s309 = sand.u32 %s26, 1
        %s310 = scalar_lea.sflag [#allocation7], %s309
        %s311 = sand.u32 %s74, 1
        %s312 = smul.addr %s311, 128
        %s313 = scalar_lea.vmem [#allocation6], %s312
        %p314 = pneg %p87
        %p315 = pneg %p84
        %p316 = pneg %p108
        %p317 = pneg %p105
        %p318 = pneg %p129
        %p319 = pneg %p126
        %p320 = pneg %p150
        %p321 = pneg %p147
        %p322 = pneg %p176
        %p323 = pneg %p173
        %s324 = sand.u32 %s163, 1
        %s325 = scalar_lea.sflag [#allocation5], %s324
        %s326 = sand.u32 %s163, 1
        %s327 = smul.addr %s326, 128
        %s328 = scalar_lea.vmem [#allocation11], %s327
        %s329 = smul.u32 32, %s30
        %s330 = smul.u32 2, %s31
        %s331 = smul.u32 32, %s31
        %s332 = smul.u32 32, %s30
        %p334 = scmp.eq.s32.totalorder %s31, 0
        // Predicated region
        $region57: #{tpu_custom_call.1} parent=39 // pred_check
          %p335 = pneg %p334
        $region58: #{tpu_custom_call.1} parent=39 // pred_check_branch
          %337 = sbr.rel (%p335) target = $region60
        $region59: #{tpu_custom_call.1} parent=39 // pred_region
          %338 = vst [vmem:[#allocation2] sm:$0xff] 0.0
          %339 = vst [vmem:[#allocation2 + $0x8] sm:$0xff] 0.0
          %340 = vst [vmem:[#allocation2 + $0x10] sm:$0xff] 0.0
          %341 = vst [vmem:[#allocation2 + $0x18] sm:$0xff] 0.0
          %342 = vst [vmem:[#allocation2 + $0x20] sm:$0xff] 0.0
          %343 = vst [vmem:[#allocation2 + $0x28] sm:$0xff] 0.0
          %344 = vst [vmem:[#allocation2 + $0x30] sm:$0xff] 0.0
          %345 = vst [vmem:[#allocation2 + $0x38] sm:$0xff] 0.0
          %346 = vst [vmem:[#allocation2 + $0x40] sm:$0xff] 0.0
          %347 = vst [vmem:[#allocation2 + $0x48] sm:$0xff] 0.0
          %348 = vst [vmem:[#allocation2 + $0x50] sm:$0xff] 0.0
          %349 = vst [vmem:[#allocation2 + $0x58] sm:$0xff] 0.0
          %350 = vst [vmem:[#allocation2 + $0x60] sm:$0xff] 0.0
          %351 = vst [vmem:[#allocation2 + $0x68] sm:$0xff] 0.0
          %352 = vst [vmem:[#allocation2 + $0x70] sm:$0xff] 0.0
          %353 = vst [vmem:[#allocation2 + $0x78] sm:$0xff] 0.0
          %354 = vst [vmem:[#allocation2 + $0x80] sm:$0xff] 0.0
          %355 = vst [vmem:[#allocation2 + $0x88] sm:$0xff] 0.0
          %356 = vst [vmem:[#allocation2 + $0x90] sm:$0xff] 0.0
          %357 = vst [vmem:[#allocation2 + $0x98] sm:$0xff] 0.0
          %358 = vst [vmem:[#allocation2 + $0xa0] sm:$0xff] 0.0
          %359 = vst [vmem:[#allocation2 + $0xa8] sm:$0xff] 0.0
          %360 = vst [vmem:[#allocation2 + $0xb0] sm:$0xff] 0.0
          %361 = vst [vmem:[#allocation2 + $0xb8] sm:$0xff] 0.0
          %362 = vst [vmem:[#allocation2 + $0xc0] sm:$0xff] 0.0
          %363 = vst [vmem:[#allocation2 + $0xc8] sm:$0xff] 0.0
          %364 = vst [vmem:[#allocation2 + $0xd0] sm:$0xff] 0.0
          %365 = vst [vmem:[#allocation2 + $0xd8] sm:$0xff] 0.0
          %366 = vst [vmem:[#allocation2 + $0xe0] sm:$0xff] 0.0
          %367 = vst [vmem:[#allocation2 + $0xe8] sm:$0xff] 0.0
          %368 = vst [vmem:[#allocation2 + $0xf0] sm:$0xff] 0.0
          %369 = vst [vmem:[#allocation2 + $0xf8] sm:$0xff] 0.0
        $region60: #{tpu_custom_call.1} parent=39 // pred_fallthru
          _
        %v370 = vld [vmem:[#allocation2] sm:$0xff]
        %v371 = vld [vmem:[#allocation2 + $0x8] sm:$0xff]
        %v372 = vld [vmem:[#allocation2 + $0x10] sm:$0xff]
        %v373 = vld [vmem:[#allocation2 + $0x18] sm:$0xff]
        %v374 = vld [vmem:[#allocation2 + $0x20] sm:$0xff]
        %v375 = vld [vmem:[#allocation2 + $0x28] sm:$0xff]
        %v376 = vld [vmem:[#allocation2 + $0x30] sm:$0xff]
        %v377 = vld [vmem:[#allocation2 + $0x38] sm:$0xff]
        %v378 = vld [vmem:[#allocation2 + $0x40] sm:$0xff]
        %v379 = vld [vmem:[#allocation2 + $0x48] sm:$0xff]
        %v380 = vld [vmem:[#allocation2 + $0x50] sm:$0xff]
        %v381 = vld [vmem:[#allocation2 + $0x58] sm:$0xff]
        %v382 = vld [vmem:[#allocation2 + $0x60] sm:$0xff]
        %v383 = vld [vmem:[#allocation2 + $0x68] sm:$0xff]
        %v384 = vld [vmem:[#allocation2 + $0x70] sm:$0xff]
        %v385 = vld [vmem:[#allocation2 + $0x78] sm:$0xff]
        %v386 = vld [vmem:[#allocation2 + $0x80] sm:$0xff]
        %v387 = vld [vmem:[#allocation2 + $0x88] sm:$0xff]
        %v388 = vld [vmem:[#allocation2 + $0x90] sm:$0xff]
        %v389 = vld [vmem:[#allocation2 + $0x98] sm:$0xff]
        %v390 = vld [vmem:[#allocation2 + $0xa0] sm:$0xff]
        %v391 = vld [vmem:[#allocation2 + $0xa8] sm:$0xff]
        %v392 = vld [vmem:[#allocation2 + $0xb0] sm:$0xff]
        %v393 = vld [vmem:[#allocation2 + $0xb8] sm:$0xff]
        %v394 = vld [vmem:[#allocation2 + $0xc0] sm:$0xff]
        %v395 = vld [vmem:[#allocation2 + $0xc8] sm:$0xff]
        %v396 = vld [vmem:[#allocation2 + $0xd0] sm:$0xff]
        %v397 = vld [vmem:[#allocation2 + $0xd8] sm:$0xff]
        %v398 = vld [vmem:[#allocation2 + $0xe0] sm:$0xff]
        %v399 = vld [vmem:[#allocation2 + $0xe8] sm:$0xff]
        %v400 = vld [vmem:[#allocation2 + $0xf0] sm:$0xff]
        %v401 = vld [vmem:[#allocation2 + $0xf8] sm:$0xff]
        %v402 = vld [vmem:[%s280] sm:$0xff]
        %v403 = vld [vmem:[%s280 + $0x8] sm:$0xff]
        %v404 = vld [vmem:[%s280 + $0x10] sm:$0xff]
        %v405 = vld [vmem:[%s280 + $0x18] sm:$0xff]
        %v406 = vld [vmem:[%s280 + $0x20] sm:$0xff]
        %v407 = vld [vmem:[%s280 + $0x28] sm:$0xff]
        %v408 = vld [vmem:[%s280 + $0x30] sm:$0xff]
        %v409 = vld [vmem:[%s280 + $0x38] sm:$0xff]
        %v410 = vld [vmem:[%s280 + $0x40] sm:$0xff]
        %v411 = vld [vmem:[%s280 + $0x48] sm:$0xff]
        %v412 = vld [vmem:[%s280 + $0x50] sm:$0xff]
        %v413 = vld [vmem:[%s280 + $0x58] sm:$0xff]
        %v414 = vld [vmem:[%s280 + $0x60] sm:$0xff]
        %v415 = vld [vmem:[%s280 + $0x68] sm:$0xff]
        %v416 = vld [vmem:[%s280 + $0x70] sm:$0xff]
        %v417 = vld [vmem:[%s280 + $0x78] sm:$0xff]
        %v418 = vld [vmem:[%s280 + $0x80] sm:$0xff]
        %v419 = vld [vmem:[%s280 + $0x88] sm:$0xff]
        %v420 = vld [vmem:[%s280 + $0x90] sm:$0xff]
        %v421 = vld [vmem:[%s280 + $0x98] sm:$0xff]
        %v422 = vld [vmem:[%s280 + $0xa0] sm:$0xff]
        %v423 = vld [vmem:[%s280 + $0xa8] sm:$0xff]
        %v424 = vld [vmem:[%s280 + $0xb0] sm:$0xff]
        %v425 = vld [vmem:[%s280 + $0xb8] sm:$0xff]
        %v426 = vld [vmem:[%s280 + $0xc0] sm:$0xff]
        %v427 = vld [vmem:[%s280 + $0xc8] sm:$0xff]
        %v428 = vld [vmem:[%s280 + $0xd0] sm:$0xff]
        %v429 = vld [vmem:[%s280 + $0xd8] sm:$0xff]
        %v430 = vld [vmem:[%s280 + $0xe0] sm:$0xff]
        %v431 = vld [vmem:[%s280 + $0xe8] sm:$0xff]
        %v432 = vld [vmem:[%s280 + $0xf0] sm:$0xff]
        %v433 = vld [vmem:[%s280 + $0xf8] sm:$0xff]
        %v434 = vld [vmem:[%s289] sm:$0xf]
        %v435 = vld [vmem:[%s289 + $0x4] sm:$0xf]
        %v436 = vld [vmem:[%s289 + $0x8] sm:$0xf]
        %v437 = vld [vmem:[%s289 + $0xc] sm:$0xf]
        %v438 = vld [vmem:[%s289 + $0x10] sm:$0xf]
        %v439 = vld [vmem:[%s289 + $0x14] sm:$0xf]
        %v440 = vld [vmem:[%s289 + $0x18] sm:$0xf]
        %v441 = vld [vmem:[%s289 + $0x1c] sm:$0xf]
        %v442 = vld [vmem:[%s289 + $0x20] sm:$0xf]
        %v443 = vld [vmem:[%s289 + $0x24] sm:$0xf]
        %v444 = vld [vmem:[%s289 + $0x28] sm:$0xf]
        %v445 = vld [vmem:[%s289 + $0x2c] sm:$0xf]
        %v446 = vld [vmem:[%s289 + $0x30] sm:$0xf]
        %v447 = vld [vmem:[%s289 + $0x34] sm:$0xf]
        %v448 = vld [vmem:[%s289 + $0x38] sm:$0xf]
        %v449 = vld [vmem:[%s289 + $0x3c] sm:$0xf]
        %v450 = vld [vmem:[%s289 + $0x40] sm:$0xf]
        %v451 = vld [vmem:[%s289 + $0x44] sm:$0xf]
        %v452 = vld [vmem:[%s289 + $0x48] sm:$0xf]
        %v453 = vld [vmem:[%s289 + $0x4c] sm:$0xf]
        %v454 = vld [vmem:[%s289 + $0x50] sm:$0xf]
        %v455 = vld [vmem:[%s289 + $0x54] sm:$0xf]
        %v456 = vld [vmem:[%s289 + $0x58] sm:$0xf]
        %v457 = vld [vmem:[%s289 + $0x5c] sm:$0xf]
        %v458 = vld [vmem:[%s289 + $0x60] sm:$0xf]
        %v459 = vld [vmem:[%s289 + $0x64] sm:$0xf]
        %v460 = vld [vmem:[%s289 + $0x68] sm:$0xf]
        %v461 = vld [vmem:[%s289 + $0x6c] sm:$0xf]
        %v462 = vld [vmem:[%s289 + $0x70] sm:$0xf]
        %v463 = vld [vmem:[%s289 + $0x74] sm:$0xf]
        %v464 = vld [vmem:[%s289 + $0x78] sm:$0xf]
        %v465 = vld [vmem:[%s289 + $0x7c] sm:$0xf]
        %v498 = vunpack.c.l.b16 %v402
        %v499 = vunpack.c.h.b16 %v402
        %v500 = vunpack.c.l.b16 %v403
        %v501 = vunpack.c.h.b16 %v403
        %v502 = vunpack.c.l.b16 %v404
        %v503 = vunpack.c.h.b16 %v404
        %v504 = vunpack.c.l.b16 %v405
        %v505 = vunpack.c.h.b16 %v405
        %v506 = vunpack.c.l.b16 %v406
        %v507 = vunpack.c.h.b16 %v406
        %v508 = vunpack.c.l.b16 %v407
        %v509 = vunpack.c.h.b16 %v407
        %v510 = vunpack.c.l.b16 %v408
        %v511 = vunpack.c.h.b16 %v408
        %v512 = vunpack.c.l.b16 %v409
        %v513 = vunpack.c.h.b16 %v409
        %v514 = vunpack.c.l.b16 %v410
        %v515 = vunpack.c.h.b16 %v410
        %v516 = vunpack.c.l.b16 %v411
        %v517 = vunpack.c.h.b16 %v411
        %v518 = vunpack.c.l.b16 %v412
        %v519 = vunpack.c.h.b16 %v412
        %v520 = vunpack.c.l.b16 %v413
        %v521 = vunpack.c.h.b16 %v413
        %v522 = vunpack.c.l.b16 %v414
        %v523 = vunpack.c.h.b16 %v414
        %v524 = vunpack.c.l.b16 %v415
        %v525 = vunpack.c.h.b16 %v415
        %v526 = vunpack.c.l.b16 %v416
        %v527 = vunpack.c.h.b16 %v416
        %v528 = vunpack.c.l.b16 %v417
        %v529 = vunpack.c.h.b16 %v417
        %v530 = vunpack.c.l.b16 %v418
        %v531 = vunpack.c.h.b16 %v418
        %v532 = vunpack.c.l.b16 %v419
        %v533 = vunpack.c.h.b16 %v419
        %v534 = vunpack.c.l.b16 %v420
        %v535 = vunpack.c.h.b16 %v420
        %v536 = vunpack.c.l.b16 %v421
        %v537 = vunpack.c.h.b16 %v421
        %v538 = vunpack.c.l.b16 %v422
        %v539 = vunpack.c.h.b16 %v422
        %v540 = vunpack.c.l.b16 %v423
        %v541 = vunpack.c.h.b16 %v423
        %v542 = vunpack.c.l.b16 %v424
        %v543 = vunpack.c.h.b16 %v424
        %v544 = vunpack.c.l.b16 %v425
        %v545 = vunpack.c.h.b16 %v425
        %v546 = vunpack.c.l.b16 %v426
        %v547 = vunpack.c.h.b16 %v426
        %v548 = vunpack.c.l.b16 %v427
        %v549 = vunpack.c.h.b16 %v427
        %v550 = vunpack.c.l.b16 %v428
        %v551 = vunpack.c.h.b16 %v428
        %v552 = vunpack.c.l.b16 %v429
        %v553 = vunpack.c.h.b16 %v429
        %v554 = vunpack.c.l.b16 %v430
        %v555 = vunpack.c.h.b16 %v430
        %v556 = vunpack.c.l.b16 %v431
        %v557 = vunpack.c.h.b16 %v431
        %v558 = vunpack.c.l.b16 %v432
        %v559 = vunpack.c.h.b16 %v432
        %v560 = vunpack.c.l.b16 %v433
        %v561 = vunpack.c.h.b16 %v433
        %v562 = vpack.c.b16 %v500, %v498
        %v563 = vpack.c.b16 %v501, %v499
        %v564 = vpack.c.b16 %v504, %v502
        %v565 = vpack.c.b16 %v505, %v503
        %v566 = vpack.c.b16 %v508, %v506
        %v567 = vpack.c.b16 %v509, %v507
        %v568 = vpack.c.b16 %v512, %v510
        %v569 = vpack.c.b16 %v513, %v511
        %v570 = vpack.c.b16 %v516, %v514
        %v571 = vpack.c.b16 %v517, %v515
        %v572 = vpack.c.b16 %v520, %v518
        %v573 = vpack.c.b16 %v521, %v519
        %v574 = vpack.c.b16 %v524, %v522
        %v575 = vpack.c.b16 %v525, %v523
        %v576 = vpack.c.b16 %v528, %v526
        %v577 = vpack.c.b16 %v529, %v527
        %v578 = vpack.c.b16 %v532, %v530
        %v579 = vpack.c.b16 %v533, %v531
        %v580 = vpack.c.b16 %v536, %v534
        %v581 = vpack.c.b16 %v537, %v535
        %v582 = vpack.c.b16 %v540, %v538
        %v583 = vpack.c.b16 %v541, %v539
        %v584 = vpack.c.b16 %v544, %v542
        %v585 = vpack.c.b16 %v545, %v543
        %v586 = vpack.c.b16 %v548, %v546
        %v587 = vpack.c.b16 %v549, %v547
        %v588 = vpack.c.b16 %v552, %v550
        %v589 = vpack.c.b16 %v553, %v551
        %v590 = vpack.c.b16 %v556, %v554
        %v591 = vpack.c.b16 %v557, %v555
        %v592 = vpack.c.b16 %v560, %v558
        %v593 = vpack.c.b16 %v561, %v559
        %v658 = vunpack.c.l.b16 %v434
        %v659 = vunpack.c.l.b16 %v435
        %v660 = vunpack.c.l.b16 %v436
        %v661 = vunpack.c.l.b16 %v437
        %v662 = vunpack.c.l.b16 %v438
        %v663 = vunpack.c.l.b16 %v439
        %v664 = vunpack.c.l.b16 %v440
        %v665 = vunpack.c.l.b16 %v441
        %v666 = vunpack.c.l.b16 %v442
        %v667 = vunpack.c.l.b16 %v443
        %v668 = vunpack.c.l.b16 %v444
        %v669 = vunpack.c.l.b16 %v445
        %v670 = vunpack.c.l.b16 %v446
        %v671 = vunpack.c.l.b16 %v447
        %v672 = vunpack.c.l.b16 %v448
        %v673 = vunpack.c.l.b16 %v449
        %v674 = vunpack.c.l.b16 %v450
        %v675 = vunpack.c.l.b16 %v451
        %v676 = vunpack.c.l.b16 %v452
        %v677 = vunpack.c.l.b16 %v453
        %v678 = vunpack.c.l.b16 %v454
        %v679 = vunpack.c.l.b16 %v455
        %v680 = vunpack.c.l.b16 %v456
        %v681 = vunpack.c.l.b16 %v457
        %v682 = vunpack.c.l.b16 %v458
        %v683 = vunpack.c.l.b16 %v459
        %v684 = vunpack.c.l.b16 %v460
        %v685 = vunpack.c.l.b16 %v461
        %v686 = vunpack.c.l.b16 %v462
        %v687 = vunpack.c.l.b16 %v463
        %v688 = vunpack.c.l.b16 %v464
        %v689 = vunpack.c.l.b16 %v465
        %v690 = vpack.c.b16 %v659, %v658
        %v691 = vpack.c.b16 %v661, %v660
        %v692 = vpack.c.b16 %v663, %v662
        %v693 = vpack.c.b16 %v665, %v664
        %v694 = vpack.c.b16 %v667, %v666
        %v695 = vpack.c.b16 %v669, %v668
        %v696 = vpack.c.b16 %v671, %v670
        %v697 = vpack.c.b16 %v673, %v672
        %v698 = vpack.c.b16 %v675, %v674
        %v699 = vpack.c.b16 %v677, %v676
        %v700 = vpack.c.b16 %v679, %v678
        %v701 = vpack.c.b16 %v681, %v680
        %v702 = vpack.c.b16 %v683, %v682
        %v703 = vpack.c.b16 %v685, %v684
        %v704 = vpack.c.b16 %v687, %v686
        %v705 = vpack.c.b16 %v689, %v688
        %722 = vmatprep.subr.bf16.mxu0 0
        %723 = vmatpush1.bf16.msra.mxu0 %v690
        %724 = vmatprep.subr.bf16.mxu0 0
        %725 = vmatpush1.bf16.msra.mxu0 %v691
        %726 = vmatprep.subr.bf16.mxu0 0
        %727 = vmatpush1.bf16.msra.mxu0 %v692
        %728 = vmatprep.subr.bf16.mxu0 0
        %729 = vmatpush1.bf16.msra.mxu0 %v693
        %730 = vmatprep.subr.bf16.mxu0 0
        %731 = vmatpush1.bf16.msra.mxu0 %v694
        %732 = vmatprep.subr.bf16.mxu0 0
        %733 = vmatpush1.bf16.msra.mxu0 %v695
        %734 = vmatprep.subr.bf16.mxu0 0
        %735 = vmatpush1.bf16.msra.mxu0 %v696
        %736 = vmatprep.subr.bf16.mxu0 0
        %737 = vmatpush1.bf16.msra.mxu0 %v697
        %738 = vmatprep.subr.bf16.mxu0 0
        %739 = vmatpush1.bf16.msra.mxu0 %v698
        %740 = vmatprep.subr.bf16.mxu0 0
        %741 = vmatpush1.bf16.msra.mxu0 %v699
        %742 = vmatprep.subr.bf16.mxu0 0
        %743 = vmatpush1.bf16.msra.mxu0 %v700
        %744 = vmatprep.subr.bf16.mxu0 0
        %745 = vmatpush1.bf16.msra.mxu0 %v701
        %746 = vmatprep.subr.bf16.mxu0 0
        %747 = vmatpush1.bf16.msra.mxu0 %v702
        %748 = vmatprep.subr.bf16.mxu0 0
        %749 = vmatpush1.bf16.msra.mxu0 %v703
        %750 = vmatprep.subr.bf16.mxu0 0
        %751 = vmatpush1.bf16.msra.mxu0 %v704
        %752 = vmatprep.subr.bf16.mxu0 0
        %753 = vmatpush1.bf16.msra.mxu0 %v705
        %754 = vmatprep.mubr.bf16.mxu0 %v563
        %755 = vmatmul.mubr.bf16.gmra.mrb[0].mxu0 %v562
        %v756 = vpop.f32.mrb[0].mxu0
        %v757 = vadd.f32 0.0, %v756
        %v758 = vpop.f32.mrb[0].mxu0
        %v759 = vpop.f32.mrb[0].mxu0
        %v760 = vadd.f32 0.0, %v759
        %v761 = vpop.f32.mrb[0].mxu0
        %762 = vmatprep.mubr.bf16.mxu0 %v565
        %763 = vmatmul.mubr.bf16.gmra.mrb[0].mxu0 %v564
        %v764 = vpop.f32.mrb[0].mxu0
        %v765 = vadd.f32 0.0, %v764
        %v766 = vpop.f32.mrb[0].mxu0
        %v767 = vpop.f32.mrb[0].mxu0
        %v768 = vadd.f32 0.0, %v767
        %v769 = vpop.f32.mrb[0].mxu0
        %770 = vmatprep.mubr.bf16.mxu0 %v567
        %771 = vmatmul.mubr.bf16.gmra.mrb[0].mxu0 %v566
        %v772 = vpop.f32.mrb[0].mxu0
        %v773 = vadd.f32 0.0, %v772
        %v774 = vpop.f32.mrb[0].mxu0
        %v775 = vpop.f32.mrb[0].mxu0
        %v776 = vadd.f32 0.0, %v775
        %v777 = vpop.f32.mrb[0].mxu0
        %778 = vmatprep.mubr.bf16.mxu0 %v569
        %779 = vmatmul.mubr.bf16.gmra.mrb[0].mxu0 %v568
        %v780 = vpop.f32.mrb[0].mxu0
        %v781 = vadd.f32 0.0, %v780
        %v782 = vpop.f32.mrb[0].mxu0
        %v783 = vpop.f32.mrb[0].mxu0
        %v784 = vadd.f32 0.0, %v783
        %v785 = vpop.f32.mrb[0].mxu0
        %786 = vmatprep.mubr.bf16.mxu0 %v571
        %787 = vmatmul.mubr.bf16.gmra.mrb[0].mxu0 %v570
        %v788 = vpop.f32.mrb[0].mxu0
        %v789 = vadd.f32 0.0, %v788
        %v790 = vpop.f32.mrb[0].mxu0
        %v791 = vpop.f32.mrb[0].mxu0
        %v792 = vadd.f32 0.0, %v791
        %v793 = vpop.f32.mrb[0].mxu0
        %794 = vmatprep.mubr.bf16.mxu0 %v573
        %795 = vmatmul.mubr.bf16.gmra.mrb[0].mxu0 %v572
        %v796 = vpop.f32.mrb[0].mxu0
        %v797 = vadd.f32 0.0, %v796
        %v798 = vpop.f32.mrb[0].mxu0
        %v799 = vpop.f32.mrb[0].mxu0
        %v800 = vadd.f32 0.0, %v799
        %v801 = vpop.f32.mrb[0].mxu0
        %802 = vmatprep.mubr.bf16.mxu0 %v575
        %803 = vmatmul.mubr.bf16.gmra.mrb[0].mxu0 %v574
        %v804 = vpop.f32.mrb[0].mxu0
        %v805 = vadd.f32 0.0, %v804
        %v806 = vpop.f32.mrb[0].mxu0
        %v807 = vpop.f32.mrb[0].mxu0
        %v808 = vadd.f32 0.0, %v807
        %v809 = vpop.f32.mrb[0].mxu0
        %810 = vmatprep.mubr.bf16.mxu0 %v577
        %811 = vmatmul.mubr.bf16.gmra.mrb[0].mxu0 %v576
        %v812 = vpop.f32.mrb[0].mxu0
        %v813 = vadd.f32 0.0, %v812
        %v814 = vpop.f32.mrb[0].mxu0
        %v815 = vpop.f32.mrb[0].mxu0
        %v816 = vadd.f32 0.0, %v815
        %v817 = vpop.f32.mrb[0].mxu0
        %818 = vmatprep.mubr.bf16.mxu0 %v579
        %819 = vmatmul.mubr.bf16.gmra.mrb[0].mxu0 %v578
        %v820 = vpop.f32.mrb[0].mxu0
        %v821 = vadd.f32 0.0, %v820
        %v822 = vpop.f32.mrb[0].mxu0
        %v823 = vpop.f32.mrb[0].mxu0
        %v824 = vadd.f32 0.0, %v823
        %v825 = vpop.f32.mrb[0].mxu0
        %826 = vmatprep.mubr.bf16.mxu0 %v581
        %827 = vmatmul.mubr.bf16.gmra.mrb[0].mxu0 %v580
        %v828 = vpop.f32.mrb[0].mxu0
        %v829 = vadd.f32 0.0, %v828
        %v830 = vpop.f32.mrb[0].mxu0
        %v831 = vpop.f32.mrb[0].mxu0
        %v832 = vadd.f32 0.0, %v831
        %v833 = vpop.f32.mrb[0].mxu0
        %834 = vmatprep.mubr.bf16.mxu0 %v583
        %835 = vmatmul.mubr.bf16.gmra.mrb[0].mxu0 %v582
        %v836 = vpop.f32.mrb[0].mxu0
        %v837 = vadd.f32 0.0, %v836
        %v838 = vpop.f32.mrb[0].mxu0
        %v839 = vpop.f32.mrb[0].mxu0
        %v840 = vadd.f32 0.0, %v839
        %v841 = vpop.f32.mrb[0].mxu0
        %842 = vmatprep.mubr.bf16.mxu0 %v585
        %843 = vmatmul.mubr.bf16.gmra.mrb[0].mxu0 %v584
        %v844 = vpop.f32.mrb[0].mxu0
        %v845 = vadd.f32 0.0, %v844
        %v846 = vpop.f32.mrb[0].mxu0
        %v847 = vpop.f32.mrb[0].mxu0
        %v848 = vadd.f32 0.0, %v847
        %v849 = vpop.f32.mrb[0].mxu0
        %850 = vmatprep.mubr.bf16.mxu0 %v587
        %851 = vmatmul.mubr.bf16.gmra.mrb[0].mxu0 %v586
        %v852 = vpop.f32.mrb[0].mxu0
        %v853 = vadd.f32 0.0, %v852
        %v854 = vpop.f32.mrb[0].mxu0
        %v855 = vpop.f32.mrb[0].mxu0
        %v856 = vadd.f32 0.0, %v855
        %v857 = vpop.f32.mrb[0].mxu0
        %858 = vmatprep.mubr.bf16.mxu0 %v589
        %859 = vmatmul.mubr.bf16.gmra.mrb[0].mxu0 %v588
        %v860 = vpop.f32.mrb[0].mxu0
        %v861 = vadd.f32 0.0, %v860
        %v862 = vpop.f32.mrb[0].mxu0
        %v863 = vpop.f32.mrb[0].mxu0
        %v864 = vadd.f32 0.0, %v863
        %v865 = vpop.f32.mrb[0].mxu0
        %866 = vmatprep.mubr.bf16.mxu0 %v591
        %867 = vmatmul.mubr.bf16.gmra.mrb[0].mxu0 %v590
        %v868 = vpop.f32.mrb[0].mxu0
        %v869 = vadd.f32 0.0, %v868
        %v870 = vpop.f32.mrb[0].mxu0
        %v871 = vpop.f32.mrb[0].mxu0
        %v872 = vadd.f32 0.0, %v871
        %v873 = vpop.f32.mrb[0].mxu0
        %874 = vmatprep.mubr.bf16.mxu0 %v593
        %875 = vmatmul.mubr.bf16.gmra.mrb[0].mxu0 %v592
        %v876 = vpop.f32.mrb[0].mxu0
        %v877 = vadd.f32 0.0, %v876
        %v878 = vpop.f32.mrb[0].mxu0
        %v879 = vpop.f32.mrb[0].mxu0
        %v880 = vadd.f32 0.0, %v879
        %v881 = vpop.f32.mrb[0].mxu0
        %882 = vdwg.mxu0
        %v883 = vadd.f32 %v370, %v757
        %v884 = vadd.f32 %v371, %v760
        %v885 = vadd.f32 %v372, %v765
        %v886 = vadd.f32 %v373, %v768
        %v887 = vadd.f32 %v374, %v773
        %v888 = vadd.f32 %v375, %v776
        %v889 = vadd.f32 %v376, %v781
        %v890 = vadd.f32 %v377, %v784
        %v891 = vadd.f32 %v378, %v789
        %v892 = vadd.f32 %v379, %v792
        %v893 = vadd.f32 %v380, %v797
        %v894 = vadd.f32 %v381, %v800
        %v895 = vadd.f32 %v382, %v805
        %v896 = vadd.f32 %v383, %v808
        %v897 = vadd.f32 %v384, %v813
        %v898 = vadd.f32 %v385, %v816
        %v899 = vadd.f32 %v386, %v821
        %v900 = vadd.f32 %v387, %v824
        %v901 = vadd.f32 %v388, %v829
        %v902 = vadd.f32 %v389, %v832
        %v903 = vadd.f32 %v390, %v837
        %v904 = vadd.f32 %v391, %v840
        %v905 = vadd.f32 %v392, %v845
        %v906 = vadd.f32 %v393, %v848
        %v907 = vadd.f32 %v394, %v853
        %v908 = vadd.f32 %v395, %v856
        %v909 = vadd.f32 %v396, %v861
        %v910 = vadd.f32 %v397, %v864
        %v911 = vadd.f32 %v398, %v869
        %v912 = vadd.f32 %v399, %v872
        %v913 = vadd.f32 %v400, %v877
        %v914 = vadd.f32 %v401, %v880
        %915 = vst [vmem:[#allocation2] sm:$0xff] %v883
        %916 = vst [vmem:[#allocation2 + $0x8] sm:$0xff] %v884
        %917 = vst [vmem:[#allocation2 + $0x10] sm:$0xff] %v885
        %918 = vst [vmem:[#allocation2 + $0x18] sm:$0xff] %v886
        %919 = vst [vmem:[#allocation2 + $0x20] sm:$0xff] %v887
        %920 = vst [vmem:[#allocation2 + $0x28] sm:$0xff] %v888
        %921 = vst [vmem:[#allocation2 + $0x30] sm:$0xff] %v889
        %922 = vst [vmem:[#allocation2 + $0x38] sm:$0xff] %v890
        %923 = vst [vmem:[#allocation2 + $0x40] sm:$0xff] %v891
        %924 = vst [vmem:[#allocation2 + $0x48] sm:$0xff] %v892
        %925 = vst [vmem:[#allocation2 + $0x50] sm:$0xff] %v893
        %926 = vst [vmem:[#allocation2 + $0x58] sm:$0xff] %v894
        %927 = vst [vmem:[#allocation2 + $0x60] sm:$0xff] %v895
        %928 = vst [vmem:[#allocation2 + $0x68] sm:$0xff] %v896
        %929 = vst [vmem:[#allocation2 + $0x70] sm:$0xff] %v897
        %930 = vst [vmem:[#allocation2 + $0x78] sm:$0xff] %v898
        %931 = vst [vmem:[#allocation2 + $0x80] sm:$0xff] %v899
        %932 = vst [vmem:[#allocation2 + $0x88] sm:$0xff] %v900
        %933 = vst [vmem:[#allocation2 + $0x90] sm:$0xff] %v901
        %934 = vst [vmem:[#allocation2 + $0x98] sm:$0xff] %v902
        %935 = vst [vmem:[#allocation2 + $0xa0] sm:$0xff] %v903
        %936 = vst [vmem:[#allocation2 + $0xa8] sm:$0xff] %v904
        %937 = vst [vmem:[#allocation2 + $0xb0] sm:$0xff] %v905
        %938 = vst [vmem:[#allocation2 + $0xb8] sm:$0xff] %v906
        %939 = vst [vmem:[#allocation2 + $0xc0] sm:$0xff] %v907
        %940 = vst [vmem:[#allocation2 + $0xc8] sm:$0xff] %v908
        %941 = vst [vmem:[#allocation2 + $0xd0] sm:$0xff] %v909
        %942 = vst [vmem:[#allocation2 + $0xd8] sm:$0xff] %v910
        %943 = vst [vmem:[#allocation2 + $0xe0] sm:$0xff] %v911
        %944 = vst [vmem:[#allocation2 + $0xe8] sm:$0xff] %v912
        %945 = vst [vmem:[#allocation2 + $0xf0] sm:$0xff] %v913
        %946 = vst [vmem:[#allocation2 + $0xf8] sm:$0xff] %v914
        %p947 = scmp.eq.s32.totalorder %s31, 1
        // Predicated region
        $region61: #{tpu_custom_call.1} parent=39 // pred_check
          %p948 = pneg %p947
        $region62: #{tpu_custom_call.1} parent=39 // pred_check_branch
          %950 = sbr.rel (%p948) target = $region64
        $region63: #{tpu_custom_call.1} parent=39 // pred_region
          %v951 = vld [vmem:[#allocation2] sm:$0xff]
          %v952 = vld [vmem:[#allocation2 + $0x8] sm:$0xff]
          %v953 = vld [vmem:[#allocation2 + $0x10] sm:$0xff]
          %v954 = vld [vmem:[#allocation2 + $0x18] sm:$0xff]
          %v955 = vld [vmem:[#allocation2 + $0x20] sm:$0xff]
          %v956 = vld [vmem:[#allocation2 + $0x28] sm:$0xff]
          %v957 = vld [vmem:[#allocation2 + $0x30] sm:$0xff]
          %v958 = vld [vmem:[#allocation2 + $0x38] sm:$0xff]
          %v959 = vld [vmem:[#allocation2 + $0x40] sm:$0xff]
          %v960 = vld [vmem:[#allocation2 + $0x48] sm:$0xff]
          %v961 = vld [vmem:[#allocation2 + $0x50] sm:$0xff]
          %v962 = vld [vmem:[#allocation2 + $0x58] sm:$0xff]
          %v963 = vld [vmem:[#allocation2 + $0x60] sm:$0xff]
          %v964 = vld [vmem:[#allocation2 + $0x68] sm:$0xff]
          %v965 = vld [vmem:[#allocation2 + $0x70] sm:$0xff]
          %v966 = vld [vmem:[#allocation2 + $0x78] sm:$0xff]
          %v967 = vld [vmem:[#allocation2 + $0x80] sm:$0xff]
          %v968 = vld [vmem:[#allocation2 + $0x88] sm:$0xff]
          %v969 = vld [vmem:[#allocation2 + $0x90] sm:$0xff]
          %v970 = vld [vmem:[#allocation2 + $0x98] sm:$0xff]
          %v971 = vld [vmem:[#allocation2 + $0xa0] sm:$0xff]
          %v972 = vld [vmem:[#allocation2 + $0xa8] sm:$0xff]
          %v973 = vld [vmem:[#allocation2 + $0xb0] sm:$0xff]
          %v974 = vld [vmem:[#allocation2 + $0xb8] sm:$0xff]
          %v975 = vld [vmem:[#allocation2 + $0xc0] sm:$0xff]
          %v976 = vld [vmem:[#allocation2 + $0xc8] sm:$0xff]
          %v977 = vld [vmem:[#allocation2 + $0xd0] sm:$0xff]
          %v978 = vld [vmem:[#allocation2 + $0xd8] sm:$0xff]
          %v979 = vld [vmem:[#allocation2 + $0xe0] sm:$0xff]
          %v980 = vld [vmem:[#allocation2 + $0xe8] sm:$0xff]
          %v981 = vld [vmem:[#allocation2 + $0xf0] sm:$0xff]
          %v982 = vld [vmem:[#allocation2 + $0xf8] sm:$0xff]
          %v983 = vpack.c.bf16 %v952, %v951
          %v984 = vpack.c.bf16 %v954, %v953
          %v985 = vpack.c.bf16 %v956, %v955
          %v986 = vpack.c.bf16 %v958, %v957
          %v987 = vpack.c.bf16 %v960, %v959
          %v988 = vpack.c.bf16 %v962, %v961
          %v989 = vpack.c.bf16 %v964, %v963
          %v990 = vpack.c.bf16 %v966, %v965
          %v991 = vpack.c.bf16 %v968, %v967
          %v992 = vpack.c.bf16 %v970, %v969
          %v993 = vpack.c.bf16 %v972, %v971
          %v994 = vpack.c.bf16 %v974, %v973
          %v995 = vpack.c.bf16 %v976, %v975
          %v996 = vpack.c.bf16 %v978, %v977
          %v997 = vpack.c.bf16 %v980, %v979
          %v998 = vpack.c.bf16 %v982, %v981
          %v999 = vld [vmem:[#allocation8] sm:$0xf]
          %v1000 = vld [vmem:[#allocation8 + $0x4] sm:$0xf]
          %v1001 = vld [vmem:[#allocation8 + $0x8] sm:$0xf]
          %v1002 = vld [vmem:[#allocation8 + $0xc] sm:$0xf]
          %v1003 = vld [vmem:[#allocation8 + $0x10] sm:$0xf]
          %v1004 = vld [vmem:[#allocation8 + $0x14] sm:$0xf]
          %v1005 = vld [vmem:[#allocation8 + $0x18] sm:$0xf]
          %v1006 = vld [vmem:[#allocation8 + $0x1c] sm:$0xf]
          %v1007 = vld [vmem:[#allocation8 + $0x20] sm:$0xf]
          %v1008 = vld [vmem:[#allocation8 + $0x24] sm:$0xf]
          %v1009 = vld [vmem:[#allocation8 + $0x28] sm:$0xf]
          %v1010 = vld [vmem:[#allocation8 + $0x2c] sm:$0xf]
          %v1011 = vld [vmem:[#allocation8 + $0x30] sm:$0xf]
          %v1012 = vld [vmem:[#allocation8 + $0x34] sm:$0xf]
          %v1013 = vld [vmem:[#allocation8 + $0x38] sm:$0xf]
          %v1014 = vld [vmem:[#allocation8 + $0x3c] sm:$0xf]
          %v1015 = vld [vmem:[%s3] sm:$0x1]
          %v1017 = vlaneseq
          %v1018 = vshrl.u32 %v1017, 7
          %v1019 = vsub.s32 0, %v1018
          %v1020 = vrot.slane %v1015, %v1019
          %v1038 = vunpack.c.l.b16 %v999
          %v1039 = vunpack.c.l.b16 %v1000
          %v1040 = vunpack.c.l.b16 %v1001
          %v1041 = vunpack.c.l.b16 %v1002
          %v1042 = vunpack.c.l.b16 %v1003
          %v1043 = vunpack.c.l.b16 %v1004
          %v1044 = vunpack.c.l.b16 %v1005
          %v1045 = vunpack.c.l.b16 %v1006
          %v1046 = vunpack.c.l.b16 %v1007
          %v1047 = vunpack.c.l.b16 %v1008
          %v1048 = vunpack.c.l.b16 %v1009
          %v1049 = vunpack.c.l.b16 %v1010
          %v1050 = vunpack.c.l.b16 %v1011
          %v1051 = vunpack.c.l.b16 %v1012
          %v1052 = vunpack.c.l.b16 %v1013
          %v1053 = vunpack.c.l.b16 %v1014
          %v1054 = vpack.c.b16 %v1039, %v1038
          %v1055 = vpack.c.b16 %v1041, %v1040
          %v1056 = vpack.c.b16 %v1043, %v1042
          %v1057 = vpack.c.b16 %v1045, %v1044
          %v1058 = vpack.c.b16 %v1047, %v1046
          %v1059 = vpack.c.b16 %v1049, %v1048
          %v1060 = vpack.c.b16 %v1051, %v1050
          %v1061 = vpack.c.b16 %v1053, %v1052
          %1070 = vmatprep.subr.bf16.mxu0 0
          %1071 = vmatpush1.bf16.msra.mxu0 %v1054
          %1072 = vmatprep.subr.bf16.mxu0 0
          %1073 = vmatpush1.bf16.msra.mxu0 %v1055
          %1074 = vmatprep.subr.bf16.mxu0 0
          %1075 = vmatpush1.bf16.msra.mxu0 %v1056
          %1076 = vmatprep.subr.bf16.mxu0 0
          %1077 = vmatpush1.bf16.msra.mxu0 %v1057
          %1078 = vmatprep.subr.bf16.mxu0 0
          %1079 = vmatpush1.bf16.msra.mxu0 %v1058
          %1080 = vmatprep.subr.bf16.mxu0 0
          %1081 = vmatpush1.bf16.msra.mxu0 %v1059
          %1082 = vmatprep.subr.bf16.mxu0 0
          %1083 = vmatpush1.bf16.msra.mxu0 %v1060
          %1084 = vmatprep.subr.bf16.mxu0 0
          %1085 = vmatpush1.bf16.msra.mxu0 %v1061
          %1086 = vmatprep.subr.bf16.mxu0 0
          %1087 = vmatpush1.bf16.msra.mxu0 0
          %1088 = vmatprep.subr.bf16.mxu0 0
          %1089 = vmatpush1.bf16.msra.mxu0 0
          %1090 = vmatprep.subr.bf16.mxu0 0
          %1091 = vmatpush1.bf16.msra.mxu0 0
          %1092 = vmatprep.subr.bf16.mxu0 0
          %1093 = vmatpush1.bf16.msra.mxu0 0
          %1094 = vmatprep.subr.bf16.mxu0 0
          %1095 = vmatpush1.bf16.msra.mxu0 0
          %1096 = vmatprep.subr.bf16.mxu0 0
          %1097 = vmatpush1.bf16.msra.mxu0 0
          %1098 = vmatprep.subr.bf16.mxu0 0
          %1099 = vmatpush1.bf16.msra.mxu0 0
          %1100 = vmatprep.subr.bf16.mxu0 0
          %1101 = vmatpush1.bf16.msra.mxu0 0
          %1102 = vmatprep.mubr.bf16.mxu0 0
          %1103 = vmatmul.mubr.bf16.gmra.mrb[0].mxu0 %v983
          %v1104 = vpop.f32.mrb[0].mxu0
          %v1105 = vadd.f32 %v1020, %v1104
          %v1106 = vpop.f32.mrb[0].mxu0
          %v1107 = vpop.f32.mrb[0].mxu0
          %v1108 = vadd.f32 %v1020, %v1107
          %v1109 = vpop.f32.mrb[0].mxu0
          %1110 = vmatprep.mubr.bf16.mxu0 0
          %1111 = vmatmul.mubr.bf16.gmra.mrb[0].mxu0 %v984
          %v1112 = vpop.f32.mrb[0].mxu0
          %v1113 = vadd.f32 %v1020, %v1112
          %v1114 = vpop.f32.mrb[0].mxu0
          %v1115 = vpop.f32.mrb[0].mxu0
          %v1116 = vadd.f32 %v1020, %v1115
          %v1117 = vpop.f32.mrb[0].mxu0
          %1118 = vmatprep.mubr.bf16.mxu0 0
          %1119 = vmatmul.mubr.bf16.gmra.mrb[0].mxu0 %v985
          %v1120 = vpop.f32.mrb[0].mxu0
          %v1121 = vadd.f32 %v1020, %v1120
          %v1122 = vpop.f32.mrb[0].mxu0
          %v1123 = vpop.f32.mrb[0].mxu0
          %v1124 = vadd.f32 %v1020, %v1123
          %v1125 = vpop.f32.mrb[0].mxu0
          %1126 = vmatprep.mubr.bf16.mxu0 0
          %1127 = vmatmul.mubr.bf16.gmra.mrb[0].mxu0 %v986
          %v1128 = vpop.f32.mrb[0].mxu0
          %v1129 = vadd.f32 %v1020, %v1128
          %v1130 = vpop.f32.mrb[0].mxu0
          %v1131 = vpop.f32.mrb[0].mxu0
          %v1132 = vadd.f32 %v1020, %v1131
          %v1133 = vpop.f32.mrb[0].mxu0
          %1134 = vmatprep.mubr.bf16.mxu0 0
          %1135 = vmatmul.mubr.bf16.gmra.mrb[0].mxu0 %v987
          %v1136 = vpop.f32.mrb[0].mxu0
          %v1137 = vadd.f32 %v1020, %v1136
          %v1138 = vpop.f32.mrb[0].mxu0
          %v1139 = vpop.f32.mrb[0].mxu0
          %v1140 = vadd.f32 %v1020, %v1139
          %v1141 = vpop.f32.mrb[0].mxu0
          %1142 = vmatprep.mubr.bf16.mxu0 0
          %1143 = vmatmul.mubr.bf16.gmra.mrb[0].mxu0 %v988
          %v1144 = vpop.f32.mrb[0].mxu0
          %v1145 = vadd.f32 %v1020, %v1144
          %v1146 = vpop.f32.mrb[0].mxu0
          %v1147 = vpop.f32.mrb[0].mxu0
          %v1148 = vadd.f32 %v1020, %v1147
          %v1149 = vpop.f32.mrb[0].mxu0
          %1150 = vmatprep.mubr.bf16.mxu0 0
          %1151 = vmatmul.mubr.bf16.gmra.mrb[0].mxu0 %v989
          %v1152 = vpop.f32.mrb[0].mxu0
          %v1153 = vadd.f32 %v1020, %v1152
          %v1154 = vpop.f32.mrb[0].mxu0
          %v1155 = vpop.f32.mrb[0].mxu0
          %v1156 = vadd.f32 %v1020, %v1155
          %v1157 = vpop.f32.mrb[0].mxu0
          %1158 = vmatprep.mubr.bf16.mxu0 0
          %1159 = vmatmul.mubr.bf16.gmra.mrb[0].mxu0 %v990
          %v1160 = vpop.f32.mrb[0].mxu0
          %v1161 = vadd.f32 %v1020, %v1160
          %v1162 = vpop.f32.mrb[0].mxu0
          %v1163 = vpop.f32.mrb[0].mxu0
          %v1164 = vadd.f32 %v1020, %v1163
          %v1165 = vpop.f32.mrb[0].mxu0
          %1166 = vmatprep.mubr.bf16.mxu0 0
          %1167 = vmatmul.mubr.bf16.gmra.mrb[0].mxu0 %v991
          %v1168 = vpop.f32.mrb[0].mxu0
          %v1169 = vadd.f32 %v1020, %v1168
          %v1170 = vpop.f32.mrb[0].mxu0
          %v1171 = vpop.f32.mrb[0].mxu0
          %v1172 = vadd.f32 %v1020, %v1171
          %v1173 = vpop.f32.mrb[0].mxu0
          %1174 = vmatprep.mubr.bf16.mxu0 0
          %1175 = vmatmul.mubr.bf16.gmra.mrb[0].mxu0 %v992
          %v1176 = vpop.f32.mrb[0].mxu0
          %v1177 = vadd.f32 %v1020, %v1176
          %v1178 = vpop.f32.mrb[0].mxu0
          %v1179 = vpop.f32.mrb[0].mxu0
          %v1180 = vadd.f32 %v1020, %v1179
          %v1181 = vpop.f32.mrb[0].mxu0
          %1182 = vmatprep.mubr.bf16.mxu0 0
          %1183 = vmatmul.mubr.bf16.gmra.mrb[0].mxu0 %v993
          %v1184 = vpop.f32.mrb[0].mxu0
          %v1185 = vadd.f32 %v1020, %v1184
          %v1186 = vpop.f32.mrb[0].mxu0
          %v1187 = vpop.f32.mrb[0].mxu0
          %v1188 = vadd.f32 %v1020, %v1187
          %v1189 = vpop.f32.mrb[0].mxu0
          %1190 = vmatprep.mubr.bf16.mxu0 0
          %1191 = vmatmul.mubr.bf16.gmra.mrb[0].mxu0 %v994
          %v1192 = vpop.f32.mrb[0].mxu0
          %v1193 = vadd.f32 %v1020, %v1192
          %v1194 = vpop.f32.mrb[0].mxu0
          %v1195 = vpop.f32.mrb[0].mxu0
          %v1196 = vadd.f32 %v1020, %v1195
          %v1197 = vpop.f32.mrb[0].mxu0
          %1198 = vmatprep.mubr.bf16.mxu0 0
          %1199 = vmatmul.mubr.bf16.gmra.mrb[0].mxu0 %v995
          %v1200 = vpop.f32.mrb[0].mxu0
          %v1201 = vadd.f32 %v1020, %v1200
          %v1202 = vpop.f32.mrb[0].mxu0
          %v1203 = vpop.f32.mrb[0].mxu0
          %v1204 = vadd.f32 %v1020, %v1203
          %v1205 = vpop.f32.mrb[0].mxu0
          %1206 = vmatprep.mubr.bf16.mxu0 0
          %1207 = vmatmul.mubr.bf16.gmra.mrb[0].mxu0 %v996
          %v1208 = vpop.f32.mrb[0].mxu0
          %v1209 = vadd.f32 %v1020, %v1208
          %v1210 = vpop.f32.mrb[0].mxu0
          %v1211 = vpop.f32.mrb[0].mxu0
          %v1212 = vadd.f32 %v1020, %v1211
          %v1213 = vpop.f32.mrb[0].mxu0
          %1214 = vmatprep.mubr.bf16.mxu0 0
          %1215 = vmatmul.mubr.bf16.gmra.mrb[0].mxu0 %v997
          %v1216 = vpop.f32.mrb[0].mxu0
          %v1217 = vadd.f32 %v1020, %v1216
          %v1218 = vpop.f32.mrb[0].mxu0
          %v1219 = vpop.f32.mrb[0].mxu0
          %v1220 = vadd.f32 %v1020, %v1219
          %v1221 = vpop.f32.mrb[0].mxu0
          %1222 = vmatprep.mubr.bf16.mxu0 0
          %1223 = vmatmul.mubr.bf16.gmra.mrb[0].mxu0 %v998
          %v1224 = vpop.f32.mrb[0].mxu0
          %v1225 = vadd.f32 %v1020, %v1224
          %v1226 = vpop.f32.mrb[0].mxu0
          %v1227 = vpop.f32.mrb[0].mxu0
          %v1228 = vadd.f32 %v1020, %v1227
          %v1229 = vpop.f32.mrb[0].mxu0
          %1230 = vdwg.mxu0
          %v1231 = vmax.f32 %v1105, 0.0
          %v1232 = vmax.f32 %v1108, 0.0
          %v1233 = vmax.f32 %v1113, 0.0
          %v1234 = vmax.f32 %v1116, 0.0
          %v1235 = vmax.f32 %v1121, 0.0
          %v1236 = vmax.f32 %v1124, 0.0
          %v1237 = vmax.f32 %v1129, 0.0
          %v1238 = vmax.f32 %v1132, 0.0
          %v1239 = vmax.f32 %v1137, 0.0
          %v1240 = vmax.f32 %v1140, 0.0
          %v1241 = vmax.f32 %v1145, 0.0
          %v1242 = vmax.f32 %v1148, 0.0
          %v1243 = vmax.f32 %v1153, 0.0
          %v1244 = vmax.f32 %v1156, 0.0
          %v1245 = vmax.f32 %v1161, 0.0
          %v1246 = vmax.f32 %v1164, 0.0
          %v1247 = vmax.f32 %v1169, 0.0
          %v1248 = vmax.f32 %v1172, 0.0
          %v1249 = vmax.f32 %v1177, 0.0
          %v1250 = vmax.f32 %v1180, 0.0
          %v1251 = vmax.f32 %v1185, 0.0
          %v1252 = vmax.f32 %v1188, 0.0
          %v1253 = vmax.f32 %v1193, 0.0
          %v1254 = vmax.f32 %v1196, 0.0
          %v1255 = vmax.f32 %v1201, 0.0
          %v1256 = vmax.f32 %v1204, 0.0
          %v1257 = vmax.f32 %v1209, 0.0
          %v1258 = vmax.f32 %v1212, 0.0
          %v1259 = vmax.f32 %v1217, 0.0
          %v1260 = vmax.f32 %v1220, 0.0
          %v1261 = vmax.f32 %v1225, 0.0
          %v1262 = vmax.f32 %v1228, 0.0
          %v1263 = vpack.c.bf16 %v1232, %v1231
          %v1264 = vpack.c.bf16 %v1234, %v1233
          %v1265 = vpack.c.bf16 %v1236, %v1235
          %v1266 = vpack.c.bf16 %v1238, %v1237
          %v1267 = vpack.c.bf16 %v1240, %v1239
          %v1268 = vpack.c.bf16 %v1242, %v1241
          %v1269 = vpack.c.bf16 %v1244, %v1243
          %v1270 = vpack.c.bf16 %v1246, %v1245
          %v1271 = vpack.c.bf16 %v1248, %v1247
          %v1272 = vpack.c.bf16 %v1250, %v1249
          %v1273 = vpack.c.bf16 %v1252, %v1251
          %v1274 = vpack.c.bf16 %v1254, %v1253
          %v1275 = vpack.c.bf16 %v1256, %v1255
          %v1276 = vpack.c.bf16 %v1258, %v1257
          %v1277 = vpack.c.bf16 %v1260, %v1259
          %v1278 = vpack.c.bf16 %v1262, %v1261
          %v1279 = vld [vmem:[#allocation9] sm:$0xf]
          %v1280 = vld [vmem:[#allocation9 + $0x4] sm:$0xf]
          %v1281 = vld [vmem:[#allocation9 + $0x8] sm:$0xf]
          %v1282 = vld [vmem:[#allocation9 + $0xc] sm:$0xf]
          %v1283 = vld [vmem:[#allocation9 + $0x10] sm:$0xf]
          %v1284 = vld [vmem:[#allocation9 + $0x14] sm:$0xf]
          %v1285 = vld [vmem:[#allocation9 + $0x18] sm:$0xf]
          %v1286 = vld [vmem:[#allocation9 + $0x1c] sm:$0xf]
          %v1287 = vld [vmem:[#allocation9 + $0x20] sm:$0xf]
          %v1288 = vld [vmem:[#allocation9 + $0x24] sm:$0xf]
          %v1289 = vld [vmem:[#allocation9 + $0x28] sm:$0xf]
          %v1290 = vld [vmem:[#allocation9 + $0x2c] sm:$0xf]
          %v1291 = vld [vmem:[#allocation9 + $0x30] sm:$0xf]
          %v1292 = vld [vmem:[#allocation9 + $0x34] sm:$0xf]
          %v1293 = vld [vmem:[#allocation9 + $0x38] sm:$0xf]
          %v1294 = vld [vmem:[#allocation9 + $0x3c] sm:$0xf]
          %v1311 = vunpack.c.l.b16 %v1279
          %v1312 = vunpack.c.l.b16 %v1280
          %v1313 = vunpack.c.l.b16 %v1281
          %v1314 = vunpack.c.l.b16 %v1282
          %v1315 = vunpack.c.l.b16 %v1283
          %v1316 = vunpack.c.l.b16 %v1284
          %v1317 = vunpack.c.l.b16 %v1285
          %v1318 = vunpack.c.l.b16 %v1286
          %v1319 = vunpack.c.l.b16 %v1287
          %v1320 = vunpack.c.l.b16 %v1288
          %v1321 = vunpack.c.l.b16 %v1289
          %v1322 = vunpack.c.l.b16 %v1290
          %v1323 = vunpack.c.l.b16 %v1291
          %v1324 = vunpack.c.l.b16 %v1292
          %v1325 = vunpack.c.l.b16 %v1293
          %v1326 = vunpack.c.l.b16 %v1294
          %v1327 = vpack.c.b16 %v1312, %v1311
          %v1328 = vpack.c.b16 %v1314, %v1313
          %v1329 = vpack.c.b16 %v1316, %v1315
          %v1330 = vpack.c.b16 %v1318, %v1317
          %v1331 = vpack.c.b16 %v1320, %v1319
          %v1332 = vpack.c.b16 %v1322, %v1321
          %v1333 = vpack.c.b16 %v1324, %v1323
          %v1334 = vpack.c.b16 %v1326, %v1325
          %1343 = vmatprep.subr.bf16.mxu0 0
          %1344 = vmatpush1.bf16.msra.mxu0 %v1327
          %1345 = vmatprep.subr.bf16.mxu0 0
          %1346 = vmatpush1.bf16.msra.mxu0 %v1328
          %1347 = vmatprep.subr.bf16.mxu0 0
          %1348 = vmatpush1.bf16.msra.mxu0 %v1329
          %1349 = vmatprep.subr.bf16.mxu0 0
          %1350 = vmatpush1.bf16.msra.mxu0 %v1330
          %1351 = vmatprep.subr.bf16.mxu0 0
          %1352 = vmatpush1.bf16.msra.mxu0 %v1331
          %1353 = vmatprep.subr.bf16.mxu0 0
          %1354 = vmatpush1.bf16.msra.mxu0 %v1332
          %1355 = vmatprep.subr.bf16.mxu0 0
          %1356 = vmatpush1.bf16.msra.mxu0 %v1333
          %1357 = vmatprep.subr.bf16.mxu0 0
          %1358 = vmatpush1.bf16.msra.mxu0 %v1334
          %1359 = vmatprep.subr.bf16.mxu0 0
          %1360 = vmatpush1.bf16.msra.mxu0 0
          %1361 = vmatprep.subr.bf16.mxu0 0
          %1362 = vmatpush1.bf16.msra.mxu0 0
          %1363 = vmatprep.subr.bf16.mxu0 0
          %1364 = vmatpush1.bf16.msra.mxu0 0
          %1365 = vmatprep.subr.bf16.mxu0 0
          %1366 = vmatpush1.bf16.msra.mxu0 0
          %1367 = vmatprep.subr.bf16.mxu0 0
          %1368 = vmatpush1.bf16.msra.mxu0 0
          %1369 = vmatprep.subr.bf16.mxu0 0
          %1370 = vmatpush1.bf16.msra.mxu0 0
          %1371 = vmatprep.subr.bf16.mxu0 0
          %1372 = vmatpush1.bf16.msra.mxu0 0
          %1373 = vmatprep.subr.bf16.mxu0 0
          %1374 = vmatpush1.bf16.msra.mxu0 0
          %1375 = vmatprep.mubr.bf16.mxu0 0
          %1376 = vmatmul.mubr.bf16.gmra.mrb[0].mxu0 %v1263
          %v1377 = vpop.f32.mrb[0].mxu0
          %v1378 = vadd.f32 0.0, %v1377
          %v1379 = vpop.f32.mrb[0].mxu0
          %v1380 = vpop.f32.mrb[0].mxu0
          %v1381 = vadd.f32 0.0, %v1380
          %v1382 = vpop.f32.mrb[0].mxu0
          %1383 = vmatprep.mubr.bf16.mxu0 0
          %1384 = vmatmul.mubr.bf16.gmra.mrb[0].mxu0 %v1264
          %v1385 = vpop.f32.mrb[0].mxu0
          %v1386 = vadd.f32 0.0, %v1385
          %v1387 = vpop.f32.mrb[0].mxu0
          %v1388 = vpop.f32.mrb[0].mxu0
          %v1389 = vadd.f32 0.0, %v1388
          %v1390 = vpop.f32.mrb[0].mxu0
          %1391 = vmatprep.mubr.bf16.mxu0 0
          %1392 = vmatmul.mubr.bf16.gmra.mrb[0].mxu0 %v1265
          %v1393 = vpop.f32.mrb[0].mxu0
          %v1394 = vadd.f32 0.0, %v1393
          %v1395 = vpop.f32.mrb[0].mxu0
          %v1396 = vpop.f32.mrb[0].mxu0
          %v1397 = vadd.f32 0.0, %v1396
          %v1398 = vpop.f32.mrb[0].mxu0
          %1399 = vmatprep.mubr.bf16.mxu0 0
          %1400 = vmatmul.mubr.bf16.gmra.mrb[0].mxu0 %v1266
          %v1401 = vpop.f32.mrb[0].mxu0
          %v1402 = vadd.f32 0.0, %v1401
          %v1403 = vpop.f32.mrb[0].mxu0
          %v1404 = vpop.f32.mrb[0].mxu0
          %v1405 = vadd.f32 0.0, %v1404
          %v1406 = vpop.f32.mrb[0].mxu0
          %1407 = vmatprep.mubr.bf16.mxu0 0
          %1408 = vmatmul.mubr.bf16.gmra.mrb[0].mxu0 %v1267
          %v1409 = vpop.f32.mrb[0].mxu0
          %v1410 = vadd.f32 0.0, %v1409
          %v1411 = vpop.f32.mrb[0].mxu0
          %v1412 = vpop.f32.mrb[0].mxu0
          %v1413 = vadd.f32 0.0, %v1412
          %v1414 = vpop.f32.mrb[0].mxu0
          %1415 = vmatprep.mubr.bf16.mxu0 0
          %1416 = vmatmul.mubr.bf16.gmra.mrb[0].mxu0 %v1268
          %v1417 = vpop.f32.mrb[0].mxu0
          %v1418 = vadd.f32 0.0, %v1417
          %v1419 = vpop.f32.mrb[0].mxu0
          %v1420 = vpop.f32.mrb[0].mxu0
          %v1421 = vadd.f32 0.0, %v1420
          %v1422 = vpop.f32.mrb[0].mxu0
          %1423 = vmatprep.mubr.bf16.mxu0 0
          %1424 = vmatmul.mubr.bf16.gmra.mrb[0].mxu0 %v1269
          %v1425 = vpop.f32.mrb[0].mxu0
          %v1426 = vadd.f32 0.0, %v1425
          %v1427 = vpop.f32.mrb[0].mxu0
          %v1428 = vpop.f32.mrb[0].mxu0
          %v1429 = vadd.f32 0.0, %v1428
          %v1430 = vpop.f32.mrb[0].mxu0
          %1431 = vmatprep.mubr.bf16.mxu0 0
          %1432 = vmatmul.mubr.bf16.gmra.mrb[0].mxu0 %v1270
          %v1433 = vpop.f32.mrb[0].mxu0
          %v1434 = vadd.f32 0.0, %v1433
          %v1435 = vpop.f32.mrb[0].mxu0
          %v1436 = vpop.f32.mrb[0].mxu0
          %v1437 = vadd.f32 0.0, %v1436
          %v1438 = vpop.f32.mrb[0].mxu0
          %1439 = vmatprep.mubr.bf16.mxu0 0
          %1440 = vmatmul.mubr.bf16.gmra.mrb[0].mxu0 %v1271
          %v1441 = vpop.f32.mrb[0].mxu0
          %v1442 = vadd.f32 0.0, %v1441
          %v1443 = vpop.f32.mrb[0].mxu0
          %v1444 = vpop.f32.mrb[0].mxu0
          %v1445 = vadd.f32 0.0, %v1444
          %v1446 = vpop.f32.mrb[0].mxu0
          %1447 = vmatprep.mubr.bf16.mxu0 0
          %1448 = vmatmul.mubr.bf16.gmra.mrb[0].mxu0 %v1272
          %v1449 = vpop.f32.mrb[0].mxu0
          %v1450 = vadd.f32 0.0, %v1449
          %v1451 = vpop.f32.mrb[0].mxu0
          %v1452 = vpop.f32.mrb[0].mxu0
          %v1453 = vadd.f32 0.0, %v1452
          %v1454 = vpop.f32.mrb[0].mxu0
          %1455 = vmatprep.mubr.bf16.mxu0 0
          %1456 = vmatmul.mubr.bf16.gmra.mrb[0].mxu0 %v1273
          %v1457 = vpop.f32.mrb[0].mxu0
          %v1458 = vadd.f32 0.0, %v1457
          %v1459 = vpop.f32.mrb[0].mxu0
          %v1460 = vpop.f32.mrb[0].mxu0
          %v1461 = vadd.f32 0.0, %v1460
          %v1462 = vpop.f32.mrb[0].mxu0
          %1463 = vmatprep.mubr.bf16.mxu0 0
          %1464 = vmatmul.mubr.bf16.gmra.mrb[0].mxu0 %v1274
          %v1465 = vpop.f32.mrb[0].mxu0
          %v1466 = vadd.f32 0.0, %v1465
          %v1467 = vpop.f32.mrb[0].mxu0
          %v1468 = vpop.f32.mrb[0].mxu0
          %v1469 = vadd.f32 0.0, %v1468
          %v1470 = vpop.f32.mrb[0].mxu0
          %1471 = vmatprep.mubr.bf16.mxu0 0
          %1472 = vmatmul.mubr.bf16.gmra.mrb[0].mxu0 %v1275
          %v1473 = vpop.f32.mrb[0].mxu0
          %v1474 = vadd.f32 0.0, %v1473
          %v1475 = vpop.f32.mrb[0].mxu0
          %v1476 = vpop.f32.mrb[0].mxu0
          %v1477 = vadd.f32 0.0, %v1476
          %v1478 = vpop.f32.mrb[0].mxu0
          %1479 = vmatprep.mubr.bf16.mxu0 0
          %1480 = vmatmul.mubr.bf16.gmra.mrb[0].mxu0 %v1276
          %v1481 = vpop.f32.mrb[0].mxu0
          %v1482 = vadd.f32 0.0, %v1481
          %v1483 = vpop.f32.mrb[0].mxu0
          %v1484 = vpop.f32.mrb[0].mxu0
          %v1485 = vadd.f32 0.0, %v1484
          %v1486 = vpop.f32.mrb[0].mxu0
          %1487 = vmatprep.mubr.bf16.mxu0 0
          %1488 = vmatmul.mubr.bf16.gmra.mrb[0].mxu0 %v1277
          %v1489 = vpop.f32.mrb[0].mxu0
          %v1490 = vadd.f32 0.0, %v1489
          %v1491 = vpop.f32.mrb[0].mxu0
          %v1492 = vpop.f32.mrb[0].mxu0
          %v1493 = vadd.f32 0.0, %v1492
          %v1494 = vpop.f32.mrb[0].mxu0
          %1495 = vmatprep.mubr.bf16.mxu0 0
          %1496 = vmatmul.mubr.bf16.gmra.mrb[0].mxu0 %v1278
          %v1497 = vpop.f32.mrb[0].mxu0
          %v1498 = vadd.f32 0.0, %v1497
          %v1499 = vpop.f32.mrb[0].mxu0
          %v1500 = vpop.f32.mrb[0].mxu0
          %v1501 = vadd.f32 0.0, %v1500
          %v1502 = vpop.f32.mrb[0].mxu0
          %1503 = vdwg.mxu0
          %v1504 = vpack.c.bf16 %v1381, %v1378
          %v1505 = vpack.c.bf16 %v1389, %v1386
          %v1506 = vpack.c.bf16 %v1397, %v1394
          %v1507 = vpack.c.bf16 %v1405, %v1402
          %v1508 = vpack.c.bf16 %v1413, %v1410
          %v1509 = vpack.c.bf16 %v1421, %v1418
          %v1510 = vpack.c.bf16 %v1429, %v1426
          %v1511 = vpack.c.bf16 %v1437, %v1434
          %v1512 = vpack.c.bf16 %v1445, %v1442
          %v1513 = vpack.c.bf16 %v1453, %v1450
          %v1514 = vpack.c.bf16 %v1461, %v1458
          %v1515 = vpack.c.bf16 %v1469, %v1466
          %v1516 = vpack.c.bf16 %v1477, %v1474
          %v1517 = vpack.c.bf16 %v1485, %v1482
          %v1518 = vpack.c.bf16 %v1493, %v1490
          %v1519 = vpack.c.bf16 %v1501, %v1498
          %v1536 = vunpack.c.l.b16 %v1504
          %v1537 = vunpack.c.h.b16 %v1504
          %v1538 = vunpack.c.l.b16 %v1505
          %v1539 = vunpack.c.h.b16 %v1505
          %v1540 = vunpack.c.l.b16 %v1506
          %v1541 = vunpack.c.h.b16 %v1506
          %v1542 = vunpack.c.l.b16 %v1507
          %v1543 = vunpack.c.h.b16 %v1507
          %v1544 = vunpack.c.l.b16 %v1508
          %v1545 = vunpack.c.h.b16 %v1508
          %v1546 = vunpack.c.l.b16 %v1509
          %v1547 = vunpack.c.h.b16 %v1509
          %v1548 = vunpack.c.l.b16 %v1510
          %v1549 = vunpack.c.h.b16 %v1510
          %v1550 = vunpack.c.l.b16 %v1511
          %v1551 = vunpack.c.h.b16 %v1511
          %v1552 = vunpack.c.l.b16 %v1512
          %v1553 = vunpack.c.h.b16 %v1512
          %v1554 = vunpack.c.l.b16 %v1513
          %v1555 = vunpack.c.h.b16 %v1513
          %v1556 = vunpack.c.l.b16 %v1514
          %v1557 = vunpack.c.h.b16 %v1514
          %v1558 = vunpack.c.l.b16 %v1515
          %v1559 = vunpack.c.h.b16 %v1515
          %v1560 = vunpack.c.l.b16 %v1516
          %v1561 = vunpack.c.h.b16 %v1516
          %v1562 = vunpack.c.l.b16 %v1517
          %v1563 = vunpack.c.h.b16 %v1517
          %v1564 = vunpack.c.l.b16 %v1518
          %v1565 = vunpack.c.h.b16 %v1518
          %v1566 = vunpack.c.l.b16 %v1519
          %v1567 = vunpack.c.h.b16 %v1519
          %v1568 = vpack.c.b16 %v1536, %v1536
          %v1569 = vpack.c.b16 %v1537, %v1537
          %v1570 = vpack.c.b16 %v1538, %v1538
          %v1571 = vpack.c.b16 %v1539, %v1539
          %v1572 = vpack.c.b16 %v1540, %v1540
          %v1573 = vpack.c.b16 %v1541, %v1541
          %v1574 = vpack.c.b16 %v1542, %v1542
          %v1575 = vpack.c.b16 %v1543, %v1543
          %v1576 = vpack.c.b16 %v1544, %v1544
          %v1577 = vpack.c.b16 %v1545, %v1545
          %v1578 = vpack.c.b16 %v1546, %v1546
          %v1579 = vpack.c.b16 %v1547, %v1547
          %v1580 = vpack.c.b16 %v1548, %v1548
          %v1581 = vpack.c.b16 %v1549, %v1549
          %v1582 = vpack.c.b16 %v1550, %v1550
          %v1583 = vpack.c.b16 %v1551, %v1551
          %v1584 = vpack.c.b16 %v1552, %v1552
          %v1585 = vpack.c.b16 %v1553, %v1553
          %v1586 = vpack.c.b16 %v1554, %v1554
          %v1587 = vpack.c.b16 %v1555, %v1555
          %v1588 = vpack.c.b16 %v1556, %v1556
          %v1589 = vpack.c.b16 %v1557, %v1557
          %v1590 = vpack.c.b16 %v1558, %v1558
          %v1591 = vpack.c.b16 %v1559, %v1559
          %v1592 = vpack.c.b16 %v1560, %v1560
          %v1593 = vpack.c.b16 %v1561, %v1561
          %v1594 = vpack.c.b16 %v1562, %v1562
          %v1595 = vpack.c.b16 %v1563, %v1563
          %v1596 = vpack.c.b16 %v1564, %v1564
          %v1597 = vpack.c.b16 %v1565, %v1565
          %v1598 = vpack.c.b16 %v1566, %v1566
          %v1599 = vpack.c.b16 %v1567, %v1567
          %1632 = vst [vmem:[%s328] sm:$0xf] %v1568
          %1633 = vst [vmem:[%s328 + $0x4] sm:$0xf] %v1569
          %1634 = vst [vmem:[%s328 + $0x8] sm:$0xf] %v1570
          %1635 = vst [vmem:[%s328 + $0xc] sm:$0xf] %v1571
          %1636 = vst [vmem:[%s328 + $0x10] sm:$0xf] %v1572
          %1637 = vst [vmem:[%s328 + $0x14] sm:$0xf] %v1573
          %1638 = vst [vmem:[%s328 + $0x18] sm:$0xf] %v1574
          %1639 = vst [vmem:[%s328 + $0x1c] sm:$0xf] %v1575
          %1640 = vst [vmem:[%s328 + $0x20] sm:$0xf] %v1576
          %1641 = vst [vmem:[%s328 + $0x24] sm:$0xf] %v1577
          %1642 = vst [vmem:[%s328 + $0x28] sm:$0xf] %v1578
          %1643 = vst [vmem:[%s328 + $0x2c] sm:$0xf] %v1579
          %1644 = vst [vmem:[%s328 + $0x30] sm:$0xf] %v1580
          %1645 = vst [vmem:[%s328 + $0x34] sm:$0xf] %v1581
          %1646 = vst [vmem:[%s328 + $0x38] sm:$0xf] %v1582
          %1647 = vst [vmem:[%s328 + $0x3c] sm:$0xf] %v1583
          %1648 = vst [vmem:[%s328 + $0x40] sm:$0xf] %v1584
          %1649 = vst [vmem:[%s328 + $0x44] sm:$0xf] %v1585
          %1650 = vst [vmem:[%s328 + $0x48] sm:$0xf] %v1586
          %1651 = vst [vmem:[%s328 + $0x4c] sm:$0xf] %v1587
          %1652 = vst [vmem:[%s328 + $0x50] sm:$0xf] %v1588
          %1653 = vst [vmem:[%s328 + $0x54] sm:$0xf] %v1589
          %1654 = vst [vmem:[%s328 + $0x58] sm:$0xf] %v1590
          %1655 = vst [vmem:[%s328 + $0x5c] sm:$0xf] %v1591
          %1656 = vst [vmem:[%s328 + $0x60] sm:$0xf] %v1592
          %1657 = vst [vmem:[%s328 + $0x64] sm:$0xf] %v1593
          %1658 = vst [vmem:[%s328 + $0x68] sm:$0xf] %v1594
          %1659 = vst [vmem:[%s328 + $0x6c] sm:$0xf] %v1595
          %1660 = vst [vmem:[%s328 + $0x70] sm:$0xf] %v1596
          %1661 = vst [vmem:[%s328 + $0x74] sm:$0xf] %v1597
          %1662 = vst [vmem:[%s328 + $0x78] sm:$0xf] %v1598
          %1663 = vst [vmem:[%s328 + $0x7c] sm:$0xf] %v1599
        $region64: #{tpu_custom_call.1} parent=39 // pred_fallthru
          _
        %s1664 = sand.u32 %s163, 1
        %s1665 = scalar_lea.sflag [#allocation5], %s1664
        %s1666 = sand.u32 %s163, 1
        %s1667 = smul.addr %s1666, 128
        %s1668 = scalar_lea.vmem [#allocation11], %s1667
        // Predicated region
        $region65: #{tpu_custom_call.1} parent=39 // pred_check
          %p1669 = pneg %p173
        $region66: #{tpu_custom_call.1} parent=39 // pred_check_branch
          %1671 = sbr.rel (%p1669) target = $region68
        $region67: #{tpu_custom_call.1} parent=39 // pred_region
          %s1672 = smul.u32 32, %s30
          %s1674 = ssub.s32 2048, 2048
          %1675 = vsyncadd %s1665, %s1674
          %s1676 = smul.addr %s1672, 64
          %s1677 = scalar_lea.hbm %s5, %s1676
          %s1678 = sshll.u32 %s1668, 4
          %s1679 = int_to_ptr.vmem [resolvable:$true] %s1678
          %1684 = dma.vmem_to_hbm [thread:$0]  %s1679, 2048, %s1677, %s1665, 64, 64, 4
        $region68: #{tpu_custom_call.1} parent=39 // pred_fallthru
          _
      $region40: #{tpu_custom_call.1} parent=5 // pred_fallthru
        _
      %p1685 = scmp.le.s32.totalorder 2, %s21
      // Predicated region
      $region69: #{tpu_custom_call.1} parent=5 // pred_check
        %p1686 = pneg %p1685
      $region70: #{tpu_custom_call.1} parent=5 // pred_check_branch
        %1688 = sbr.rel (%p1686) target = $region72
      $region71: #{tpu_custom_call.1} parent=5 // pred_region
        %s1689 = ssub.s32 %s21, 2
        // Predicated region
        $region73: #{tpu_custom_call.1} parent=71 // pred_check
          %p1690 = pneg %p179
        $region74: #{tpu_custom_call.1} parent=71 // pred_check_branch
          %1692 = sbr.rel (%p1690) target = $region76
        $region75: #{tpu_custom_call.1} parent=71 // pred_region
          %s1693 = sand.u32 %s164, 1
          %s1694 = scalar_lea.sflag [#allocation5], %s1693
          %s1695 = sand.u32 %s164, 1
          %s1696 = smul.addr %s1695, 128
          %s1697 = scalar_lea.vmem [#allocation11], %s1696
          %1698 = dma.done %s1694, 2048
        $region76: #{tpu_custom_call.1} parent=71 // pred_fallthru
          _
      $region72: #{tpu_custom_call.1} parent=5 // pred_fallthru
        _
    $region6: #{tpu_custom_call.1} parent=1 // loop_footer
      %s25 = sadd.s32 1, %s21
    $region7: #{tpu_custom_call.1} parent=1 // loop_footer_branch
      %20 = sbr.rel target = $region3
    $region8: #{tpu_custom_call.1} parent=1 // loop_exit
      _
    %1699 = vsyncpa [#allocation4], 1
    %s1700 = scalar_lea.sflag [#allocation4], 1
    %1701 = vsyncpa %s1700, 1
    %1702 = vsyncpa [#allocation7], 1
    %s1703 = scalar_lea.sflag [#allocation7], 1
    %1704 = vsyncpa %s1703, 1
    %1705 = vsyncpa [#allocation10], 1
    %1706 = vsyncpa [#allocation5], 1
    %s1707 = scalar_lea.sflag [#allocation5], 1
    %1708 = vsyncpa %s1707, 1

</llo_original>
